<compile_context>
chip_gen: v6e
topology: v6e:2x2x1
jax: 0.10.0
libtpu: 0.0.40
codegen_flags: <defaults>
</compile_context>

<pallas_src>
import jax
import jax.numpy as jnp
from jax import lax
from jax.experimental import pallas as pl
from jax.experimental.pallas import tpu as pltpu

LEAKY_SLOPE = 0.2
LANE = 128


def _leaky_relu(x):
    return jnp.where(x > 0, x, LEAKY_SLOPE * x)


def _round_up(n, m):
    return (n + m - 1) // m * m


def res_disc_block_kernel(
    x_ref,                       # (T, Cin_p)            input, batch dim squeezed
    w1a_ref, b1a_ref,            # (3*Cin_p, Cout_p), (1, Cout_p)   block1 conv k3 s2 p1
    w1b_ref, b1b_ref,            # (3*Cout_p, Cout_p), (1, Cout_p)  block1 conv k3 s1 p1
    ws1_ref, bs1_ref,            # (Cin_p,  Cout_p),  (1, Cout_p)   shortcut1 k1 s2
    w2a_ref, b2a_ref,            # (3*Cout_p, Cout_p), (1, Cout_p)  block2 conv k3 s1 p1
    w2b_ref, b2b_ref,            # (3*Cout_p, Cout_p), (1, Cout_p)  block2 conv k3 s1 p1
    ws2_ref, bs2_ref,            # (Cout_p, Cout_p),  (1, Cout_p)   shortcut2 k1 s1
    o_ref,                       # (To, Cout_p)
    xodd_scr,                    # (To+1, Cin_p)  f32   [0; x[1::2]]
    hp_scr,                      # (To+2, Cout_p) f32   zero-padded activation
):
    To, Cout_p = o_ref.shape
    Cin_p = x_ref.shape[1]
    cdt = w1a_ref.dtype          # MXU operand dtype (f32 or bf16); accum stays f32

    # Only the padding rows ever need to be zero; zero just those (3 rows total),
    # never the full scratches, and never re-zero between convs.
    xodd_scr[pl.ds(0, 1), :] = jnp.zeros((1, Cin_p), jnp.float32)
    hp_scr[pl.ds(0, 1), :] = jnp.zeros((1, Cout_p), jnp.float32)
    hp_scr[pl.ds(To + 1, 1), :] = jnp.zeros((1, Cout_p), jnp.float32)

    # Deinterleave the stride-2 input once: x_even[o] = x[2o], x_odd[o] = x[2o+1].
    x_even = x_ref[pl.ds(0, To, stride=2), :].astype(jnp.float32)
    x_odd = x_ref[pl.ds(1, To, stride=2), :].astype(jnp.float32)
    xodd_scr[pl.ds(1, To), :] = x_odd          # rows 1..To; row 0 stays zero = x[-1]

    # ---- block1 conv #1: k=3, stride 2, pad 1 — one fused K=3*Cin matmul ----
    # out[o] = W0.x[2o-1] + W1.x[2o] + W2.x[2o+1]
    cols = jnp.concatenate(
        [xodd_scr[pl.ds(0, To), :], x_even, x_odd], axis=-1).astype(cdt)
    h = jnp.dot(cols, w1a_ref[...], preferred_element_type=jnp.float32) + b1a_ref[...]
    h = _leaky_relu(h)

    def conv3_s1(act, w_ref, b_ref):
        # k=3, stride 1, pad 1: write the activation once, read 3 shifted views,
        # fuse the taps into a single K=3*Cout matmul.
        hp_scr[pl.ds(1, To), :] = act
        c = jnp.concatenate([hp_scr[pl.ds(0, To), :],
                             hp_scr[pl.ds(1, To), :],
                             hp_scr[pl.ds(2, To), :]], axis=-1).astype(cdt)
        return jnp.dot(c, w_ref[...],
                       preferred_element_type=jnp.float32) + b_ref[...]

    # ---- block1 conv #2 + shortcut1 (k=1, stride 2) ----
    y1 = conv3_s1(h, w1b_ref, b1b_ref)
    s1 = jnp.dot(x_even.astype(cdt), ws1_ref[...],
                 preferred_element_type=jnp.float32) + bs1_ref[...]
    x1 = y1 + s1

    # ---- block2: conv / leaky / conv + shortcut2 (k=1, stride 1) ----
    g = _leaky_relu(conv3_s1(x1, w2a_ref, b2a_ref))
    y2 = conv3_s1(g, w2b_ref, b2b_ref)
    s2 = jnp.dot(x1.astype(cdt), ws2_ref[...],
                 preferred_element_type=jnp.float32) + bs2_ref[...]

    o_ref[...] = (y2 + s2).astype(o_ref.dtype)


def res_disc_block_pallas(x_btc, p, *, compute_dtype=jnp.float32):
    """x_btc: (B, T, Cin) channels-last.  p: effective (weight-norm folded)
    conv params in PyTorch layout (w*: (Cout, Cin, K), b*: (Cout,)).
    Returns (B, To, Cout)."""
    B, T, Cin = x_btc.shape
    assert T % 2 == 0, "kernel assumes an even input length"
    Cout = p["w1a"].shape[0]
    To = T // 2
    Cin_p = _round_up(Cin, LANE)
    Cout_p = _round_up(Cout, LANE)

    # ---- lane-dense channel padding (zeros -> results unchanged) ----
    x_p = jnp.zeros((B, T, Cin_p), x_btc.dtype).at[:, :, :Cin].set(x_btc)

    def k3(w, cin_p):   # (Cout, Cin, 3) -> (3*cin_p, Cout_p): taps stacked along K
        k = w.shape[2]
        wt = jnp.transpose(w, (2, 1, 0))                       # (3, Cin, Cout)
        wt = jnp.zeros((k, cin_p, Cout_p), w.dtype).at[:, :w.shape[1], :Cout].set(wt)
        return wt.reshape(k * cin_p, Cout_p).astype(compute_dtype)

    def k1(w, cin_p):   # (Cout, Cin, 1) -> (cin_p, Cout_p)
        wt = jnp.transpose(w[:, :, 0], (1, 0))
        wt = jnp.zeros((cin_p, Cout_p), w.dtype).at[:w.shape[1], :Cout].set(wt)
        return wt.astype(compute_dtype)

    def bias(b):        # (Cout,) -> (1, Cout_p), kept f32 (VPU work stays f32)
        return jnp.zeros((1, Cout_p), jnp.float32).at[0, :Cout].set(b)

    args = [
        x_p,
        k3(p["w1a"], Cin_p), bias(p["b1a"]),
        k3(p["w1b"], Cout_p), bias(p["b1b"]),
        k1(p["ws1"], Cin_p), bias(p["bs1"]),
        k3(p["w2a"], Cout_p), bias(p["b2a"]),
        k3(p["w2b"], Cout_p), bias(p["b2b"]),
        k1(p["ws2"], Cout_p), bias(p["bs2"]),
    ]

    in_specs = [pl.BlockSpec((None, T, Cin_p), lambda b: (b, 0, 0))]
    for a in args[1:]:
        in_specs.append(pl.BlockSpec(a.shape, lambda b: (0, 0)))

    flops = 2 * B * To * (3 * Cin_p * Cout_p            # block1 conv1 (fused K=3*Cin)
                          + 3 * 3 * Cout_p * Cout_p     # conv1b, conv2a, conv2b
                          + Cin_p * Cout_p              # shortcut1
                          + Cout_p * Cout_p)            # shortcut2
    bytes_accessed = sum(int(a.size) * a.dtype.itemsize for a in args) \
        + B * To * Cout_p * x_btc.dtype.itemsize

    out = pl.pallas_call(
        res_disc_block_kernel,
        out_shape=jax.ShapeDtypeStruct((B, To, Cout_p), x_btc.dtype),
        grid_spec=pltpu.PrefetchScalarGridSpec(
            num_scalar_prefetch=0,
            grid=(B,),
            in_specs=in_specs,
            out_specs=pl.BlockSpec((None, To, Cout_p), lambda b: (b, 0, 0)),
            scratch_shapes=[
                pltpu.VMEM((To + 1, Cin_p), jnp.float32),
                pltpu.VMEM((To + 2, Cout_p), jnp.float32),
            ],
        ),
        compiler_params=pltpu.CompilerParams(
            dimension_semantics=("parallel",)),   # batch steps are independent
        cost_estimate=pl.CostEstimate(flops=flops, transcendentals=0,
                                      bytes_accessed=bytes_accessed),
    )(*args)
    return out[:, :, :Cout]


# --------------------------- parameter setup (plain JAX) ---------------------------

def make_weightnorm_conv(key, cout, cin, k):
    """Deterministic weight-norm Conv1d params -> effective (w, b) like PyTorch."""
    kv, kg, kb = jax.random.split(key, 3)
    v = jax.random.normal(kv, (cout, cin, k), jnp.float32) * 0.2
    g = 1.0 + 0.1 * jax.random.normal(kg, (cout,), jnp.float32)
    b = 0.1 * jax.random.normal(kb, (cout,), jnp.float32)
    norm = jnp.sqrt(jnp.sum(v * v, axis=(1, 2), keepdims=True))
    w = g[:, None, None] * v / norm          # (Cout, Cin, K) effective weight
    return w, b


def build_params(key, cin, cout):
    keys = jax.random.split(key, 6)
    w1a, b1a = make_weightnorm_conv(keys[0], cout, cin, 3)   # block1[0]
    w1b, b1b = make_weightnorm_conv(keys[1], cout, cout, 3)  # block1[2]
    ws1, bs1 = make_weightnorm_conv(keys[2], cout, cin, 1)   # shortcut1
    w2a, b2a = make_weightnorm_conv(keys[3], cout, cout, 3)  # block2[0]
    w2b, b2b = make_weightnorm_conv(keys[4], cout, cout, 3)  # block2[2]
    ws2, bs2 = make_weightnorm_conv(keys[5], cout, cout, 1)  # shortcut2
    return dict(w1a=w1a, b1a=b1a, w1b=w1b, b1b=b1b, ws1=ws1, bs1=bs1,
                w2a=w2a, b2a=b2a, w2b=w2b, b2b=b2b, ws2=ws2, bs2=bs2)


# --------------------------- pure-JAX reference (NCT, like PyTorch) ---------------------------

def conv1d_nct(x, w, b, stride, padding):
    y = lax.conv_general_dilated(x, w, (stride,), [(padding, padding)],
                                 dimension_numbers=('NCH', 'OIH', 'NCH'))
    return y + b[None, :, None]


def ref_forward(x_nct, p):
    h = conv1d_nct(x_nct, p["w1a"], p["b1a"], 2, 1)
    h = jnp.where(h > 0, h, LEAKY_SLOPE * h)
    y1 = conv1d_nct(h, p["w1b"], p["b1b"], 1, 1)
    s1 = conv1d_nct(x_nct, p["ws1"], p["bs1"], 2, 0)
    x1 = y1 + s1
    g = conv1d_nct(x1, p["w2a"], p["b2a"], 1, 1)
    g = jnp.where(g > 0, g, LEAKY_SLOPE * g)
    y2 = conv1d_nct(g, p["w2b"], p["b2b"], 1, 1)
    s2 = conv1d_nct(x1, p["ws2"], p["bs2"], 1, 0)
    return y2 + s2


if __name__ == "__main__":
    B, Cin, Cout, T = 2, 4, 8, 16

    key = jax.random.PRNGKey(0)
    kx, kp = jax.random.split(key)
    x_nct = jax.random.normal(kx, (B, Cin, T), jnp.float32)   # PyTorch layout (N, C, T)
    params = build_params(kp, Cin, Cout)

    # kernel uses channels-last layout (B, T, C)
    x_btc = jnp.transpose(x_nct, (0, 2, 1))
    out_btc = jax.block_until_ready(res_disc_block_pallas(x_btc, params))

    ref_btc = jnp.transpose(ref_forward(x_nct, params), (0, 2, 1))

    assert out_btc.shape == (B, T // 2, Cout)
    max_err = float(jnp.max(jnp.abs(out_btc - ref_btc)))
    assert jnp.allclose(out_btc, ref_btc, atol=5e-4, rtol=5e-4), max_err

    # bf16 MXU-operand variant (v6e/v7x fast path): f32 accumulation, looser check.
    out_bf16 = jax.block_until_ready(
        res_disc_block_pallas(x_btc, params, compute_dtype=jnp.bfloat16))
    assert bool(jnp.all(jnp.isfinite(out_bf16)))
    assert float(jnp.max(jnp.abs(out_bf16 - ref_btc))) < 0.25

    print("KERNEL_OK")
</pallas_src>

<mosaic_0001>
module attributes {stable_mosaic.version = 11 : i64} {
  func.func @res_disc_block_kernel(%arg0: i32, %arg1: memref<1x16x128xf32, #tpu.memory_space<vmem>>, %arg2: memref<384x128xf32, #tpu.memory_space<vmem>>, %arg3: memref<1x128xf32, #tpu.memory_space<vmem>>, %arg4: memref<384x128xf32, #tpu.memory_space<vmem>>, %arg5: memref<1x128xf32, #tpu.memory_space<vmem>>, %arg6: memref<128x128xf32, #tpu.memory_space<vmem>>, %arg7: memref<1x128xf32, #tpu.memory_space<vmem>>, %arg8: memref<384x128xf32, #tpu.memory_space<vmem>>, %arg9: memref<1x128xf32, #tpu.memory_space<vmem>>, %arg10: memref<384x128xf32, #tpu.memory_space<vmem>>, %arg11: memref<1x128xf32, #tpu.memory_space<vmem>>, %arg12: memref<128x128xf32, #tpu.memory_space<vmem>>, %arg13: memref<1x128xf32, #tpu.memory_space<vmem>>, %arg14: memref<1x8x128xf32, #tpu.memory_space<vmem>>, %arg15: memref<9x128xf32, #tpu.memory_space<vmem>>, %arg16: memref<10x128xf32, #tpu.memory_space<vmem>>) attributes {dimension_semantics = [#tpu.dimension_semantics<parallel>], iteration_bounds = array<i64: 2>, scalar_prefetch = 0 : i64, scratch_operands = 2 : i64, tpu.core_type = #tpu.core_type<tc>, window_params = [{transform_indices = @transform_0, window_bounds = array<i64: 1, 16, 128>}, {pipeline_mode = #tpu.pipeline_mode<synchronous>, transform_indices = @transform_1, window_bounds = array<i64: 384, 128>}, {pipeline_mode = #tpu.pipeline_mode<synchronous>, transform_indices = @transform_2, window_bounds = array<i64: 1, 128>}, {pipeline_mode = #tpu.pipeline_mode<synchronous>, transform_indices = @transform_3, window_bounds = array<i64: 384, 128>}, {pipeline_mode = #tpu.pipeline_mode<synchronous>, transform_indices = @transform_4, window_bounds = array<i64: 1, 128>}, {pipeline_mode = #tpu.pipeline_mode<synchronous>, transform_indices = @transform_5, window_bounds = array<i64: 128, 128>}, {pipeline_mode = #tpu.pipeline_mode<synchronous>, transform_indices = @transform_6, window_bounds = array<i64: 1, 128>}, {pipeline_mode = #tpu.pipeline_mode<synchronous>, transform_indices = @transform_7, window_bounds = array<i64: 384, 128>}, {pipeline_mode = #tpu.pipeline_mode<synchronous>, transform_indices = @transform_8, window_bounds = array<i64: 1, 128>}, {pipeline_mode = #tpu.pipeline_mode<synchronous>, transform_indices = @transform_9, window_bounds = array<i64: 384, 128>}, {pipeline_mode = #tpu.pipeline_mode<synchronous>, transform_indices = @transform_10, window_bounds = array<i64: 1, 128>}, {pipeline_mode = #tpu.pipeline_mode<synchronous>, transform_indices = @transform_11, window_bounds = array<i64: 128, 128>}, {pipeline_mode = #tpu.pipeline_mode<synchronous>, transform_indices = @transform_12, window_bounds = array<i64: 1, 128>}, {transform_indices = @transform_13, window_bounds = array<i64: 1, 8, 128>}]} {
    %cst = arith.constant 0.000000e+00 : f32
    %0 = vector.broadcast %cst : f32 to vector<1x128xf32>
    %c0 = arith.constant 0 : index
    %c0_0 = arith.constant 0 : index
    %1 = vector.load %arg15[%c0, %c0_0] : memref<9x128xf32, #tpu.memory_space<vmem>>, vector<1x128xf32>
    tpu.vector_store %arg15[%c0, %c0_0], %0 {strides = array<i32>} : memref<9x128xf32, #tpu.memory_space<vmem>>, vector<1x128xf32>,
    %cst_1 = arith.constant 0.000000e+00 : f32
    %2 = vector.broadcast %cst_1 : f32 to vector<1x128xf32>
    %c0_2 = arith.constant 0 : index
    %c0_3 = arith.constant 0 : index
    %3 = vector.load %arg16[%c0_2, %c0_3] : memref<10x128xf32, #tpu.memory_space<vmem>>, vector<1x128xf32>
    tpu.vector_store %arg16[%c0_2, %c0_3], %2 {strides = array<i32>} : memref<10x128xf32, #tpu.memory_space<vmem>>, vector<1x128xf32>,
    %cst_4 = arith.constant 0.000000e+00 : f32
    %4 = vector.broadcast %cst_4 : f32 to vector<1x128xf32>
    %c9 = arith.constant 9 : index
    %c0_5 = arith.constant 0 : index
    %5 = vector.load %arg16[%c9, %c0_5] : memref<10x128xf32, #tpu.memory_space<vmem>>, vector<1x128xf32>
    tpu.vector_store %arg16[%c9, %c0_5], %4 {strides = array<i32>} : memref<10x128xf32, #tpu.memory_space<vmem>>, vector<1x128xf32>,
    %c0_6 = arith.constant 0 : index
    %c0_7 = arith.constant 0 : index
    %c0_8 = arith.constant 0 : index
    %6 = tpu.strided_load %arg1[%c0_6, %c0_7, %c0_8] {strides = array<i32: 1, 2, 1>} : memref<1x16x128xf32, #tpu.memory_space<vmem>>, vector<1x8x128xf32>
    %7 = vector.shape_cast %6 : vector<1x8x128xf32> to vector<8x128xf32>
    %c0_9 = arith.constant 0 : index
    %c1 = arith.constant 1 : index
    %c0_10 = arith.constant 0 : index
    %8 = tpu.strided_load %arg1[%c0_9, %c1, %c0_10] {strides = array<i32: 1, 2, 1>} : memref<1x16x128xf32, #tpu.memory_space<vmem>>, vector<1x8x128xf32>
    %9 = vector.shape_cast %8 : vector<1x8x128xf32> to vector<8x128xf32>
    %c1_11 = arith.constant 1 : index
    %c0_12 = arith.constant 0 : index
    %10 = vector.load %arg15[%c1_11, %c0_12] : memref<9x128xf32, #tpu.memory_space<vmem>>, vector<8x128xf32>
    tpu.vector_store %arg15[%c1_11, %c0_12], %9 {strides = array<i32>} : memref<9x128xf32, #tpu.memory_space<vmem>>, vector<8x128xf32>,
    %c0_13 = arith.constant 0 : index
    %c0_14 = arith.constant 0 : index
    %11 = vector.load %arg15[%c0_13, %c0_14] : memref<9x128xf32, #tpu.memory_space<vmem>>, vector<8x128xf32>
    %12 = tpu.concatenate %11, %7, %9 in 1 : vector<8x128xf32>, vector<8x128xf32>, vector<8x128xf32> -> vector<8x384xf32>
    %c0_15 = arith.constant 0 : index
    %c0_16 = arith.constant 0 : index
    %13 = vector.load %arg2[%c0_15, %c0_16] : memref<384x128xf32, #tpu.memory_space<vmem>>, vector<384x128xf32>
    %cst_17 = arith.constant dense<0.000000e+00> : vector<8x128xf32>
    %14 = tpu.matmul %12, %13, %cst_17 {dimension_numbers = #tpu.dot_dimension_numbers<[1], [0], [0], [1], [0, 0, 1, 1], [], []>} : vector<8x384xf32>, vector<384x128xf32>, vector<8x128xf32> -> vector<8x128xf32>
    %c0_18 = arith.constant 0 : index
    %c0_19 = arith.constant 0 : index
    %15 = vector.load %arg3[%c0_18, %c0_19] : memref<1x128xf32, #tpu.memory_space<vmem>>, vector<1x128xf32>
    %16 = vector.broadcast %15 : vector<1x128xf32> to vector<8x128xf32>
    %17 = arith.addf %14, %16 : vector<8x128xf32>
    %cst_20 = arith.constant 0.000000e+00 : f32
    %18 = vector.broadcast %cst_20 : f32 to vector<8x128xf32>
    %19 = arith.cmpf ogt, %17, %18 : vector<8x128xf32>
    %cst_21 = arith.constant 2.000000e-01 : f32
    %20 = vector.broadcast %cst_21 : f32 to vector<8x128xf32>
    %21 = arith.mulf %20, %17 : vector<8x128xf32>
    %22 = arith.select %19, %17, %21 : vector<8x128xi1>, vector<8x128xf32>
    %c1_22 = arith.constant 1 : index
    %c0_23 = arith.constant 0 : index
    %23 = vector.load %arg16[%c1_22, %c0_23] : memref<10x128xf32, #tpu.memory_space<vmem>>, vector<8x128xf32>
    tpu.vector_store %arg16[%c1_22, %c0_23], %22 {strides = array<i32>} : memref<10x128xf32, #tpu.memory_space<vmem>>, vector<8x128xf32>,
    %c0_24 = arith.constant 0 : index
    %c0_25 = arith.constant 0 : index
    %24 = vector.load %arg16[%c0_24, %c0_25] : memref<10x128xf32, #tpu.memory_space<vmem>>, vector<8x128xf32>
    %c1_26 = arith.constant 1 : index
    %c0_27 = arith.constant 0 : index
    %25 = vector.load %arg16[%c1_26, %c0_27] : memref<10x128xf32, #tpu.memory_space<vmem>>, vector<8x128xf32>
    %c2 = arith.constant 2 : index
    %c0_28 = arith.constant 0 : index
    %26 = vector.load %arg16[%c2, %c0_28] : memref<10x128xf32, #tpu.memory_space<vmem>>, vector<8x128xf32>
    %27 = tpu.concatenate %24, %25, %26 in 1 : vector<8x128xf32>, vector<8x128xf32>, vector<8x128xf32> -> vector<8x384xf32>
    %c0_29 = arith.constant 0 : index
    %c0_30 = arith.constant 0 : index
    %28 = vector.load %arg4[%c0_29, %c0_30] : memref<384x128xf32, #tpu.memory_space<vmem>>, vector<384x128xf32>
    %cst_31 = arith.constant dense<0.000000e+00> : vector<8x128xf32>
    %29 = tpu.matmul %27, %28, %cst_31 {dimension_numbers = #tpu.dot_dimension_numbers<[1], [0], [0], [1], [0, 0, 1, 1], [], []>} : vector<8x384xf32>, vector<384x128xf32>, vector<8x128xf32> -> vector<8x128xf32>
    %c0_32 = arith.constant 0 : index
    %c0_33 = arith.constant 0 : index
    %30 = vector.load %arg5[%c0_32, %c0_33] : memref<1x128xf32, #tpu.memory_space<vmem>>, vector<1x128xf32>
    %31 = vector.broadcast %30 : vector<1x128xf32> to vector<8x128xf32>
    %32 = arith.addf %29, %31 : vector<8x128xf32>
    %c0_34 = arith.constant 0 : index
    %c0_35 = arith.constant 0 : index
    %33 = vector.load %arg6[%c0_34, %c0_35] : memref<128x128xf32, #tpu.memory_space<vmem>>, vector<128x128xf32>
    %cst_36 = arith.constant dense<0.000000e+00> : vector<8x128xf32>
    %34 = tpu.matmul %7, %33, %cst_36 {dimension_numbers = #tpu.dot_dimension_numbers<[1], [0], [0], [1], [0, 0, 1, 1], [], []>} : vector<8x128xf32>, vector<128x128xf32>, vector<8x128xf32> -> vector<8x128xf32>
    %c0_37 = arith.constant 0 : index
    %c0_38 = arith.constant 0 : index
    %35 = vector.load %arg7[%c0_37, %c0_38] : memref<1x128xf32, #tpu.memory_space<vmem>>, vector<1x128xf32>
    %36 = vector.broadcast %35 : vector<1x128xf32> to vector<8x128xf32>
    %37 = arith.addf %34, %36 : vector<8x128xf32>
    %38 = arith.addf %32, %37 : vector<8x128xf32>
    %c1_39 = arith.constant 1 : index
    %c0_40 = arith.constant 0 : index
    %39 = vector.load %arg16[%c1_39, %c0_40] : memref<10x128xf32, #tpu.memory_space<vmem>>, vector<8x128xf32>
    tpu.vector_store %arg16[%c1_39, %c0_40], %38 {strides = array<i32>} : memref<10x128xf32, #tpu.memory_space<vmem>>, vector<8x128xf32>,
    %c0_41 = arith.constant 0 : index
    %c0_42 = arith.constant 0 : index
    %40 = vector.load %arg16[%c0_41, %c0_42] : memref<10x128xf32, #tpu.memory_space<vmem>>, vector<8x128xf32>
    %c1_43 = arith.constant 1 : index
    %c0_44 = arith.constant 0 : index
    %41 = vector.load %arg16[%c1_43, %c0_44] : memref<10x128xf32, #tpu.memory_space<vmem>>, vector<8x128xf32>
    %c2_45 = arith.constant 2 : index
    %c0_46 = arith.constant 0 : index
    %42 = vector.load %arg16[%c2_45, %c0_46] : memref<10x128xf32, #tpu.memory_space<vmem>>, vector<8x128xf32>
    %43 = tpu.concatenate %40, %41, %42 in 1 : vector<8x128xf32>, vector<8x128xf32>, vector<8x128xf32> -> vector<8x384xf32>
    %c0_47 = arith.constant 0 : index
    %c0_48 = arith.constant 0 : index
    %44 = vector.load %arg8[%c0_47, %c0_48] : memref<384x128xf32, #tpu.memory_space<vmem>>, vector<384x128xf32>
    %cst_49 = arith.constant dense<0.000000e+00> : vector<8x128xf32>
    %45 = tpu.matmul %43, %44, %cst_49 {dimension_numbers = #tpu.dot_dimension_numbers<[1], [0], [0], [1], [0, 0, 1, 1], [], []>} : vector<8x384xf32>, vector<384x128xf32>, vector<8x128xf32> -> vector<8x128xf32>
    %c0_50 = arith.constant 0 : index
    %c0_51 = arith.constant 0 : index
    %46 = vector.load %arg9[%c0_50, %c0_51] : memref<1x128xf32, #tpu.memory_space<vmem>>, vector<1x128xf32>
    %47 = vector.broadcast %46 : vector<1x128xf32> to vector<8x128xf32>
    %48 = arith.addf %45, %47 : vector<8x128xf32>
    %cst_52 = arith.constant 0.000000e+00 : f32
    %49 = vector.broadcast %cst_52 : f32 to vector<8x128xf32>
    %50 = arith.cmpf ogt, %48, %49 : vector<8x128xf32>
    %cst_53 = arith.constant 2.000000e-01 : f32
    %51 = vector.broadcast %cst_53 : f32 to vector<8x128xf32>
    %52 = arith.mulf %51, %48 : vector<8x128xf32>
    %53 = arith.select %50, %48, %52 : vector<8x128xi1>, vector<8x128xf32>
    %c1_54 = arith.constant 1 : index
    %c0_55 = arith.constant 0 : index
    %54 = vector.load %arg16[%c1_54, %c0_55] : memref<10x128xf32, #tpu.memory_space<vmem>>, vector<8x128xf32>
    tpu.vector_store %arg16[%c1_54, %c0_55], %53 {strides = array<i32>} : memref<10x128xf32, #tpu.memory_space<vmem>>, vector<8x128xf32>,
    %c0_56 = arith.constant 0 : index
    %c0_57 = arith.constant 0 : index
    %55 = vector.load %arg16[%c0_56, %c0_57] : memref<10x128xf32, #tpu.memory_space<vmem>>, vector<8x128xf32>
    %c1_58 = arith.constant 1 : index
    %c0_59 = arith.constant 0 : index
    %56 = vector.load %arg16[%c1_58, %c0_59] : memref<10x128xf32, #tpu.memory_space<vmem>>, vector<8x128xf32>
    %c2_60 = arith.constant 2 : index
    %c0_61 = arith.constant 0 : index
    %57 = vector.load %arg16[%c2_60, %c0_61] : memref<10x128xf32, #tpu.memory_space<vmem>>, vector<8x128xf32>
    %58 = tpu.concatenate %55, %56, %57 in 1 : vector<8x128xf32>, vector<8x128xf32>, vector<8x128xf32> -> vector<8x384xf32>
    %c0_62 = arith.constant 0 : index
    %c0_63 = arith.constant 0 : index
    %59 = vector.load %arg10[%c0_62, %c0_63] : memref<384x128xf32, #tpu.memory_space<vmem>>, vector<384x128xf32>
    %cst_64 = arith.constant dense<0.000000e+00> : vector<8x128xf32>
    %60 = tpu.matmul %58, %59, %cst_64 {dimension_numbers = #tpu.dot_dimension_numbers<[1], [0], [0], [1], [0, 0, 1, 1], [], []>} : vector<8x384xf32>, vector<384x128xf32>, vector<8x128xf32> -> vector<8x128xf32>
    %c0_65 = arith.constant 0 : index
    %c0_66 = arith.constant 0 : index
    %61 = vector.load %arg11[%c0_65, %c0_66] : memref<1x128xf32, #tpu.memory_space<vmem>>, vector<1x128xf32>
    %62 = vector.broadcast %61 : vector<1x128xf32> to vector<8x128xf32>
    %63 = arith.addf %60, %62 : vector<8x128xf32>
    %c0_67 = arith.constant 0 : index
    %c0_68 = arith.constant 0 : index
    %64 = vector.load %arg12[%c0_67, %c0_68] : memref<128x128xf32, #tpu.memory_space<vmem>>, vector<128x128xf32>
    %cst_69 = arith.constant dense<0.000000e+00> : vector<8x128xf32>
    %65 = tpu.matmul %38, %64, %cst_69 {dimension_numbers = #tpu.dot_dimension_numbers<[1], [0], [0], [1], [0, 0, 1, 1], [], []>} : vector<8x128xf32>, vector<128x128xf32>, vector<8x128xf32> -> vector<8x128xf32>
    %c0_70 = arith.constant 0 : index
    %c0_71 = arith.constant 0 : index
    %66 = vector.load %arg13[%c0_70, %c0_71] : memref<1x128xf32, #tpu.memory_space<vmem>>, vector<1x128xf32>
    %67 = vector.broadcast %66 : vector<1x128xf32> to vector<8x128xf32>
    %68 = arith.addf %65, %67 : vector<8x128xf32>
    %69 = arith.addf %63, %68 : vector<8x128xf32>
    %c0_72 = arith.constant 0 : index
    %c0_73 = arith.constant 0 : index
    %c0_74 = arith.constant 0 : index
    %70 = vector.load %arg14[%c0_72, %c0_73, %c0_74] : memref<1x8x128xf32, #tpu.memory_space<vmem>>, vector<1x8x128xf32>
    %71 = vector.shape_cast %70 : vector<1x8x128xf32> to vector<8x128xf32>
    %72 = vector.shape_cast %69 : vector<8x128xf32> to vector<1x8x128xf32>
    tpu.vector_store %arg14[%c0_72, %c0_73, %c0_74], %72 {strides = array<i32>} : memref<1x8x128xf32, #tpu.memory_space<vmem>>, vector<1x8x128xf32>,
    return
  }
  func.func @transform_0(%arg0: i32) -> (i32, i32, i32) {
    %c0_i32 = arith.constant 0 : i32
    %c0_i32_0 = arith.constant 0 : i32
    %c0_i32_1 = arith.constant 0 : i32
    return %arg0, %c0_i32, %c0_i32_0 : i32, i32, i32
  }
  func.func @transform_1(%arg0: i32) -> (i32, i32) {
    %c0_i32 = arith.constant 0 : i32
    %c0_i32_0 = arith.constant 0 : i32
    %c0_i32_1 = arith.constant 0 : i32
    return %c0_i32, %c0_i32_0 : i32, i32
  }
  func.func @transform_2(%arg0: i32) -> (i32, i32) {
    %c0_i32 = arith.constant 0 : i32
    %c0_i32_0 = arith.constant 0 : i32
    %c0_i32_1 = arith.constant 0 : i32
    return %c0_i32, %c0_i32_0 : i32, i32
  }
  func.func @transform_3(%arg0: i32) -> (i32, i32) {
    %c0_i32 = arith.constant 0 : i32
    %c0_i32_0 = arith.constant 0 : i32
    %c0_i32_1 = arith.constant 0 : i32
    return %c0_i32, %c0_i32_0 : i32, i32
  }
  func.func @transform_4(%arg0: i32) -> (i32, i32) {
    %c0_i32 = arith.constant 0 : i32
    %c0_i32_0 = arith.constant 0 : i32
    %c0_i32_1 = arith.constant 0 : i32
    return %c0_i32, %c0_i32_0 : i32, i32
  }
  func.func @transform_5(%arg0: i32) -> (i32, i32) {
    %c0_i32 = arith.constant 0 : i32
    %c0_i32_0 = arith.constant 0 : i32
    %c0_i32_1 = arith.constant 0 : i32
    return %c0_i32, %c0_i32_0 : i32, i32
  }
  func.func @transform_6(%arg0: i32) -> (i32, i32) {
    %c0_i32 = arith.constant 0 : i32
    %c0_i32_0 = arith.constant 0 : i32
    %c0_i32_1 = arith.constant 0 : i32
    return %c0_i32, %c0_i32_0 : i32, i32
  }
  func.func @transform_7(%arg0: i32) -> (i32, i32) {
    %c0_i32 = arith.constant 0 : i32
    %c0_i32_0 = arith.constant 0 : i32
    %c0_i32_1 = arith.constant 0 : i32
    return %c0_i32, %c0_i32_0 : i32, i32
  }
  func.func @transform_8(%arg0: i32) -> (i32, i32) {
    %c0_i32 = arith.constant 0 : i32
    %c0_i32_0 = arith.constant 0 : i32
    %c0_i32_1 = arith.constant 0 : i32
    return %c0_i32, %c0_i32_0 : i32, i32
  }
  func.func @transform_9(%arg0: i32) -> (i32, i32) {
    %c0_i32 = arith.constant 0 : i32
    %c0_i32_0 = arith.constant 0 : i32
    %c0_i32_1 = arith.constant 0 : i32
    return %c0_i32, %c0_i32_0 : i32, i32
  }
  func.func @transform_10(%arg0: i32) -> (i32, i32) {
    %c0_i32 = arith.constant 0 : i32
    %c0_i32_0 = arith.constant 0 : i32
    %c0_i32_1 = arith.constant 0 : i32
    return %c0_i32, %c0_i32_0 : i32, i32
  }
  func.func @transform_11(%arg0: i32) -> (i32, i32) {
    %c0_i32 = arith.constant 0 : i32
    %c0_i32_0 = arith.constant 0 : i32
    %c0_i32_1 = arith.constant 0 : i32
    return %c0_i32, %c0_i32_0 : i32, i32
  }
  func.func @transform_12(%arg0: i32) -> (i32, i32) {
    %c0_i32 = arith.constant 0 : i32
    %c0_i32_0 = arith.constant 0 : i32
    %c0_i32_1 = arith.constant 0 : i32
    return %c0_i32, %c0_i32_0 : i32, i32
  }
  func.func @transform_13(%arg0: i32) -> (i32, i32, i32) {
    %c0_i32 = arith.constant 0 : i32
    %c0_i32_0 = arith.constant 0 : i32
    %c0_i32_1 = arith.constant 0 : i32
    return %arg0, %c0_i32, %c0_i32_0 : i32, i32, i32
  }
}

</mosaic_0001>

<llo_original>
// kernel: tpu_custom_call.1
$region0: #{tpu_custom_call.1}
  #allocation0 [shape = 'u32[]', space=smem, size = 0x4, offset = 0x4, fixed_abs, tag = 'smem constant byte address 0x4 - core index']
  #allocation1 [shape = 'u32[144,128]{1,0:T(1,128)}', space=vmem, size = 0x12000, scoped, tag = 'internal scratch']
  #allocation2 [shape = 'f32[9,128]{1,0:T(8,128)}', space=vmem, size = 0x2000, scoped, tag = 'scratch operand']
  #allocation3 [shape = 'f32[10,128]{1,0:T(8,128)}', space=vmem, size = 0x2000, scoped, tag = 'scratch operand']
  %s0 = inlined_call_operand.hbm [shape: f32[2,16,128], index: 0, kind: input, shape index: {}]
  %s1 = inlined_call_operand.hbm [shape: f32[384,128], index: 1, kind: input, shape index: {}]
  %s2 = inlined_call_operand.vmem [shape: f32[1,128], index: 2, kind: input, shape index: {}]
  %s3 = inlined_call_operand.hbm [shape: f32[384,128], index: 3, kind: input, shape index: {}]
  %s4 = inlined_call_operand.vmem [shape: f32[1,128], index: 4, kind: input, shape index: {}]
  %s5 = inlined_call_operand.hbm [shape: f32[128,128], index: 5, kind: input, shape index: {}]
  %s6 = inlined_call_operand.vmem [shape: f32[1,128], index: 6, kind: input, shape index: {}]
  %s7 = inlined_call_operand.hbm [shape: f32[384,128], index: 7, kind: input, shape index: {}]
  %s8 = inlined_call_operand.vmem [shape: f32[1,128], index: 8, kind: input, shape index: {}]
  %s9 = inlined_call_operand.hbm [shape: f32[384,128], index: 9, kind: input, shape index: {}]
  %s10 = inlined_call_operand.vmem [shape: f32[1,128], index: 10, kind: input, shape index: {}]
  %s11 = inlined_call_operand.hbm [shape: f32[128,128], index: 11, kind: input, shape index: {}]
  %s12 = inlined_call_operand.vmem [shape: f32[1,128], index: 12, kind: input, shape index: {}]
  %s13 = inlined_call_operand.hbm [shape: f32[2,8,128], index: 13, kind: output, shape index: {}]
  %s14 = sld [smem:[#allocation0]]
  $region113: #{tpu_custom_call.1} parent=0
    _
  %s16 = ssub.s32 1, %s14
  %s17 = scalar_select 0, %s16, %s14
  $region1: #{tpu_custom_call.1} parent=0
    #allocation4 [shape = 'u8[16384]{0}', space=vmem, size = 0x4000, scoped, tag = 'input window, operand 0']
    #allocation5 [shape = 's32[2]{0}', space=sflag, size = 0x8, scoped, tag = 'scoped memory for tpu_custom_call.1']
    #allocation6 [shape = 's32[2]{0}', space=sflag, size = 0x8, scoped, tag = 'scoped memory for tpu_custom_call.1']
    #allocation7 [shape = 'u8[196608]{0}', space=vmem, size = 0x30000, scoped, tag = 'input window, operand 1, single buffered']
    #allocation8 [shape = 's32[1]{0}', space=sflag, size = 0x4, scoped, tag = 'scoped memory for tpu_custom_call.1']
    #allocation9 [shape = 'u8[196608]{0}', space=vmem, size = 0x30000, scoped, tag = 'input window, operand 3, single buffered']
    #allocation10 [shape = 'u8[65536]{0}', space=vmem, size = 0x10000, scoped, tag = 'input window, operand 5, single buffered']
    #allocation11 [shape = 's32[1]{0}', space=sflag, size = 0x4, scoped, tag = 'scoped memory for tpu_custom_call.1']
    #allocation12 [shape = 'u8[196608]{0}', space=vmem, size = 0x30000, scoped, tag = 'input window, operand 7, single buffered']
    #allocation13 [shape = 'u8[196608]{0}', space=vmem, size = 0x30000, scoped, tag = 'input window, operand 9, single buffered']
    #allocation14 [shape = 's32[1]{0}', space=sflag, size = 0x4, scoped, tag = 'scoped memory for tpu_custom_call.1']
    #allocation15 [shape = 'u8[65536]{0}', space=vmem, size = 0x10000, scoped, tag = 'input window, operand 11, single buffered']
    #allocation16 [shape = 'u8[8192]{0}', space=vmem, size = 0x2000, scoped, tag = 'output window, operand 0']
    %18 = vsyncpa [#allocation5], 0
    %s19 = scalar_lea.sflag [#allocation5], 1
    %20 = vsyncpa %s19, 0
    %21 = vsyncpa [#allocation8], 0
    %22 = vsyncpa [#allocation11], 0
    %23 = vsyncpa [#allocation14], 0
    %24 = vsyncpa [#allocation6], 0
    %s25 = scalar_lea.sflag [#allocation6], 1
    %26 = vsyncpa %s25, 0
    loop: start=0, step=1, limit=4
    $region2: #{tpu_custom_call.1} parent=1 // loop_pre_header
      _
    $region3: #{tpu_custom_call.1} parent=1 // loop_header
      %s28 = sphi 0, %s32
      %p29 = scmp.ge.s32.totalorder %s28, 4
      %s38 = sphi 0, %s40
      %s41 = sphi 0, %s38
      %s42 = sphi 0, %s41
      %s58 = sphi 0, %s42
      %s62 = sphi 0, %s62
      %s64 = sphi 0, %s62
      %s65 = sphi 0, %s64
      %s79 = sphi 0, %s65
      %s83 = sphi 0, %s83
      %s85 = sphi 0, %s83
      %s86 = sphi 0, %s85
      %s100 = sphi 0, %s86
      %s104 = sphi 0, %s104
      %s106 = sphi 0, %s104
      %s107 = sphi 0, %s106
      %s121 = sphi 0, %s107
      %s125 = sphi 0, %s125
      %s127 = sphi 0, %s125
      %s128 = sphi 0, %s127
      %s142 = sphi 0, %s128
      %s146 = sphi 0, %s146
      %s148 = sphi 0, %s146
      %s149 = sphi 0, %s148
      %s163 = sphi 0, %s149
      %s167 = sphi 0, %s167
      %s169 = sphi 0, %s167
      %s170 = sphi 0, %s169
      %s184 = sphi 0, %s170
      %s188 = sphi 0, %s188
      %s190 = sphi 0, %s188
      %s191 = sphi 0, %s190
      %s205 = sphi 0, %s191
      %s209 = sphi 0, %s209
      %s211 = sphi 0, %s209
      %s212 = sphi 0, %s211
      %s226 = sphi 0, %s212
      %s230 = sphi 0, %s230
      %s232 = sphi 0, %s230
      %s233 = sphi 0, %s232
      %s247 = sphi 0, %s233
      %s251 = sphi 0, %s251
      %s253 = sphi 0, %s251
      %s254 = sphi 0, %s253
      %s268 = sphi 0, %s254
      %s272 = sphi 0, %s272
      %s274 = sphi 0, %s272
      %s275 = sphi 0, %s274
      %s289 = sphi 0, %s275
      %s293 = sphi 0, %s293
      %s295 = sphi 0, %s293
      %s296 = sphi 0, %s295
      %s310 = sphi 0, %s296
      %s316 = sphi 0, %s318
      %s319 = sphi 0, %s316
      %s320 = sphi 0, %s319
      %s336 = sphi 0, %s320
    $region4: #{tpu_custom_call.1} parent=1 // loop_header_branch
      %31 = sbr.rel (%p29) target = $region8
    $region5: #{tpu_custom_call.1} parent=1 // loop_body
      %s33 = ssub.s32 %s28, 1
      %s34 = ssub.s32 %s28, 2
      %s35 = sadd.s32 %s28, 1
      %s36 = ssub.s32 %s28, %s35
      %p37 = scmp.eq.s32.totalorder %s36, 0
      %s39 = sadd.s32 %s38, 1
      %s40 = scalar_select %p37, %s38, %s39
      %p43 = pneg %p37
      %p44 = scmp.eq.s32.totalorder %s28, 1
      %p45 = por %p43, %p44
      %p46 = scmp.ne.s32.totalorder %s38, %s41
      %p47 = scmp.eq.s32.totalorder %s28, 0
      %p48 = por %p46, %p47
      %p49 = scmp.ne.s32.totalorder %s38, %s41
      %p50 = scmp.eq.s32.totalorder %s33, 1
      %p51 = por %p49, %p50
      %p52 = scmp.ne.s32.totalorder %s41, %s42
      %p53 = scmp.eq.s32.totalorder %s33, 0
      %p54 = por %p52, %p53
      %p55 = scmp.ne.s32.totalorder %s41, %s42
      %p56 = scmp.eq.s32.totalorder %s34, 1
      %p57 = por %p55, %p56
      %p59 = scmp.ne.s32.totalorder %s42, %s58
      %p60 = scmp.eq.s32.totalorder %s34, 0
      %p61 = por %p59, %p60
      %s63 = sadd.s32 %s62, 1
      %p66 = scmp.eq.s32.totalorder %s28, 1
      %p67 = scmp.ne.s32.totalorder %s62, %s64
      %p68 = scmp.eq.s32.totalorder %s28, 0
      %p69 = por %p67, %p68
      %p70 = scmp.ne.s32.totalorder %s62, %s64
      %p71 = scmp.eq.s32.totalorder %s33, 1
      %p72 = por %p70, %p71
      %p73 = scmp.ne.s32.totalorder %s64, %s65
      %p74 = scmp.eq.s32.totalorder %s33, 0
      %p75 = por %p73, %p74
      %p76 = scmp.ne.s32.totalorder %s64, %s65
      %p77 = scmp.eq.s32.totalorder %s34, 1
      %p78 = por %p76, %p77
      %p80 = scmp.ne.s32.totalorder %s65, %s79
      %p81 = scmp.eq.s32.totalorder %s34, 0
      %p82 = por %p80, %p81
      %s84 = sadd.s32 %s83, 1
      %p87 = scmp.eq.s32.totalorder %s28, 1
      %p88 = scmp.ne.s32.totalorder %s83, %s85
      %p89 = scmp.eq.s32.totalorder %s28, 0
      %p90 = por %p88, %p89
      %p91 = scmp.ne.s32.totalorder %s83, %s85
      %p92 = scmp.eq.s32.totalorder %s33, 1
      %p93 = por %p91, %p92
      %p94 = scmp.ne.s32.totalorder %s85, %s86
      %p95 = scmp.eq.s32.totalorder %s33, 0
      %p96 = por %p94, %p95
      %p97 = scmp.ne.s32.totalorder %s85, %s86
      %p98 = scmp.eq.s32.totalorder %s34, 1
      %p99 = por %p97, %p98
      %p101 = scmp.ne.s32.totalorder %s86, %s100
      %p102 = scmp.eq.s32.totalorder %s34, 0
      %p103 = por %p101, %p102
      %s105 = sadd.s32 %s104, 1
      %p108 = scmp.eq.s32.totalorder %s28, 1
      %p109 = scmp.ne.s32.totalorder %s104, %s106
      %p110 = scmp.eq.s32.totalorder %s28, 0
      %p111 = por %p109, %p110
      %p112 = scmp.ne.s32.totalorder %s104, %s106
      %p113 = scmp.eq.s32.totalorder %s33, 1
      %p114 = por %p112, %p113
      %p115 = scmp.ne.s32.totalorder %s106, %s107
      %p116 = scmp.eq.s32.totalorder %s33, 0
      %p117 = por %p115, %p116
      %p118 = scmp.ne.s32.totalorder %s106, %s107
      %p119 = scmp.eq.s32.totalorder %s34, 1
      %p120 = por %p118, %p119
      %p122 = scmp.ne.s32.totalorder %s107, %s121
      %p123 = scmp.eq.s32.totalorder %s34, 0
      %p124 = por %p122, %p123
      %s126 = sadd.s32 %s125, 1
      %p129 = scmp.eq.s32.totalorder %s28, 1
      %p130 = scmp.ne.s32.totalorder %s125, %s127
      %p131 = scmp.eq.s32.totalorder %s28, 0
      %p132 = por %p130, %p131
      %p133 = scmp.ne.s32.totalorder %s125, %s127
      %p134 = scmp.eq.s32.totalorder %s33, 1
      %p135 = por %p133, %p134
      %p136 = scmp.ne.s32.totalorder %s127, %s128
      %p137 = scmp.eq.s32.totalorder %s33, 0
      %p138 = por %p136, %p137
      %p139 = scmp.ne.s32.totalorder %s127, %s128
      %p140 = scmp.eq.s32.totalorder %s34, 1
      %p141 = por %p139, %p140
      %p143 = scmp.ne.s32.totalorder %s128, %s142
      %p144 = scmp.eq.s32.totalorder %s34, 0
      %p145 = por %p143, %p144
      %s147 = sadd.s32 %s146, 1
      %p150 = scmp.eq.s32.totalorder %s28, 1
      %p151 = scmp.ne.s32.totalorder %s146, %s148
      %p152 = scmp.eq.s32.totalorder %s28, 0
      %p153 = por %p151, %p152
      %p154 = scmp.ne.s32.totalorder %s146, %s148
      %p155 = scmp.eq.s32.totalorder %s33, 1
      %p156 = por %p154, %p155
      %p157 = scmp.ne.s32.totalorder %s148, %s149
      %p158 = scmp.eq.s32.totalorder %s33, 0
      %p159 = por %p157, %p158
      %p160 = scmp.ne.s32.totalorder %s148, %s149
      %p161 = scmp.eq.s32.totalorder %s34, 1
      %p162 = por %p160, %p161
      %p164 = scmp.ne.s32.totalorder %s149, %s163
      %p165 = scmp.eq.s32.totalorder %s34, 0
      %p166 = por %p164, %p165
      %s168 = sadd.s32 %s167, 1
      %p171 = scmp.eq.s32.totalorder %s28, 1
      %p172 = scmp.ne.s32.totalorder %s167, %s169
      %p173 = scmp.eq.s32.totalorder %s28, 0
      %p174 = por %p172, %p173
      %p175 = scmp.ne.s32.totalorder %s167, %s169
      %p176 = scmp.eq.s32.totalorder %s33, 1
      %p177 = por %p175, %p176
      %p178 = scmp.ne.s32.totalorder %s169, %s170
      %p179 = scmp.eq.s32.totalorder %s33, 0
      %p180 = por %p178, %p179
      %p181 = scmp.ne.s32.totalorder %s169, %s170
      %p182 = scmp.eq.s32.totalorder %s34, 1
      %p183 = por %p181, %p182
      %p185 = scmp.ne.s32.totalorder %s170, %s184
      %p186 = scmp.eq.s32.totalorder %s34, 0
      %p187 = por %p185, %p186
      %s189 = sadd.s32 %s188, 1
      %p192 = scmp.eq.s32.totalorder %s28, 1
      %p193 = scmp.ne.s32.totalorder %s188, %s190
      %p194 = scmp.eq.s32.totalorder %s28, 0
      %p195 = por %p193, %p194
      %p196 = scmp.ne.s32.totalorder %s188, %s190
      %p197 = scmp.eq.s32.totalorder %s33, 1
      %p198 = por %p196, %p197
      %p199 = scmp.ne.s32.totalorder %s190, %s191
      %p200 = scmp.eq.s32.totalorder %s33, 0
      %p201 = por %p199, %p200
      %p202 = scmp.ne.s32.totalorder %s190, %s191
      %p203 = scmp.eq.s32.totalorder %s34, 1
      %p204 = por %p202, %p203
      %p206 = scmp.ne.s32.totalorder %s191, %s205
      %p207 = scmp.eq.s32.totalorder %s34, 0
      %p208 = por %p206, %p207
      %s210 = sadd.s32 %s209, 1
      %p213 = scmp.eq.s32.totalorder %s28, 1
      %p214 = scmp.ne.s32.totalorder %s209, %s211
      %p215 = scmp.eq.s32.totalorder %s28, 0
      %p216 = por %p214, %p215
      %p217 = scmp.ne.s32.totalorder %s209, %s211
      %p218 = scmp.eq.s32.totalorder %s33, 1
      %p219 = por %p217, %p218
      %p220 = scmp.ne.s32.totalorder %s211, %s212
      %p221 = scmp.eq.s32.totalorder %s33, 0
      %p222 = por %p220, %p221
      %p223 = scmp.ne.s32.totalorder %s211, %s212
      %p224 = scmp.eq.s32.totalorder %s34, 1
      %p225 = por %p223, %p224
      %p227 = scmp.ne.s32.totalorder %s212, %s226
      %p228 = scmp.eq.s32.totalorder %s34, 0
      %p229 = por %p227, %p228
      %s231 = sadd.s32 %s230, 1
      %p234 = scmp.eq.s32.totalorder %s28, 1
      %p235 = scmp.ne.s32.totalorder %s230, %s232
      %p236 = scmp.eq.s32.totalorder %s28, 0
      %p237 = por %p235, %p236
      %p238 = scmp.ne.s32.totalorder %s230, %s232
      %p239 = scmp.eq.s32.totalorder %s33, 1
      %p240 = por %p238, %p239
      %p241 = scmp.ne.s32.totalorder %s232, %s233
      %p242 = scmp.eq.s32.totalorder %s33, 0
      %p243 = por %p241, %p242
      %p244 = scmp.ne.s32.totalorder %s232, %s233
      %p245 = scmp.eq.s32.totalorder %s34, 1
      %p246 = por %p244, %p245
      %p248 = scmp.ne.s32.totalorder %s233, %s247
      %p249 = scmp.eq.s32.totalorder %s34, 0
      %p250 = por %p248, %p249
      %s252 = sadd.s32 %s251, 1
      %p255 = scmp.eq.s32.totalorder %s28, 1
      %p256 = scmp.ne.s32.totalorder %s251, %s253
      %p257 = scmp.eq.s32.totalorder %s28, 0
      %p258 = por %p256, %p257
      %p259 = scmp.ne.s32.totalorder %s251, %s253
      %p260 = scmp.eq.s32.totalorder %s33, 1
      %p261 = por %p259, %p260
      %p262 = scmp.ne.s32.totalorder %s253, %s254
      %p263 = scmp.eq.s32.totalorder %s33, 0
      %p264 = por %p262, %p263
      %p265 = scmp.ne.s32.totalorder %s253, %s254
      %p266 = scmp.eq.s32.totalorder %s34, 1
      %p267 = por %p265, %p266
      %p269 = scmp.ne.s32.totalorder %s254, %s268
      %p270 = scmp.eq.s32.totalorder %s34, 0
      %p271 = por %p269, %p270
      %s273 = sadd.s32 %s272, 1
      %p276 = scmp.eq.s32.totalorder %s28, 1
      %p277 = scmp.ne.s32.totalorder %s272, %s274
      %p278 = scmp.eq.s32.totalorder %s28, 0
      %p279 = por %p277, %p278
      %p280 = scmp.ne.s32.totalorder %s272, %s274
      %p281 = scmp.eq.s32.totalorder %s33, 1
      %p282 = por %p280, %p281
      %p283 = scmp.ne.s32.totalorder %s274, %s275
      %p284 = scmp.eq.s32.totalorder %s33, 0
      %p285 = por %p283, %p284
      %p286 = scmp.ne.s32.totalorder %s274, %s275
      %p287 = scmp.eq.s32.totalorder %s34, 1
      %p288 = por %p286, %p287
      %p290 = scmp.ne.s32.totalorder %s275, %s289
      %p291 = scmp.eq.s32.totalorder %s34, 0
      %p292 = por %p290, %p291
      %s294 = sadd.s32 %s293, 1
      %p297 = scmp.eq.s32.totalorder %s28, 1
      %p298 = scmp.ne.s32.totalorder %s293, %s295
      %p299 = scmp.eq.s32.totalorder %s28, 0
      %p300 = por %p298, %p299
      %p301 = scmp.ne.s32.totalorder %s293, %s295
      %p302 = scmp.eq.s32.totalorder %s33, 1
      %p303 = por %p301, %p302
      %p304 = scmp.ne.s32.totalorder %s295, %s296
      %p305 = scmp.eq.s32.totalorder %s33, 0
      %p306 = por %p304, %p305
      %p307 = scmp.ne.s32.totalorder %s295, %s296
      %p308 = scmp.eq.s32.totalorder %s34, 1
      %p309 = por %p307, %p308
      %p311 = scmp.ne.s32.totalorder %s296, %s310
      %p312 = scmp.eq.s32.totalorder %s34, 0
      %p313 = por %p311, %p312
      %s314 = ssub.s32 %s28, %s35
      %p315 = scmp.eq.s32.totalorder %s314, 0
      %s317 = sadd.s32 %s316, 1
      %s318 = scalar_select %p315, %s316, %s317
      %p321 = pneg %p315
      %p322 = scmp.eq.s32.totalorder %s28, 1
      %p323 = por %p321, %p322
      %p324 = scmp.ne.s32.totalorder %s316, %s319
      %p325 = scmp.eq.s32.totalorder %s28, 0
      %p326 = por %p324, %p325
      %p327 = scmp.ne.s32.totalorder %s316, %s319
      %p328 = scmp.eq.s32.totalorder %s33, 1
      %p329 = por %p327, %p328
      %p330 = scmp.ne.s32.totalorder %s319, %s320
      %p331 = scmp.eq.s32.totalorder %s33, 0
      %p332 = por %p330, %p331
      %p333 = scmp.ne.s32.totalorder %s319, %s320
      %p334 = scmp.eq.s32.totalorder %s34, 1
      %p335 = por %p333, %p334
      %p337 = scmp.ne.s32.totalorder %s320, %s336
      %p338 = scmp.eq.s32.totalorder %s34, 0
      %p339 = por %p337, %p338
      %p340 = scmp.le.s32.totalorder 1, %s28
      %p341 = scmp.lt.s32.totalorder %s28, 3
      %p342 = pnand %p340, %p341
      %p343 = pneg %p342
      // Predicated region
      $region9: #{tpu_custom_call.1} parent=5 // pred_check
        _
      $region10: #{tpu_custom_call.1} parent=5 // pred_check_branch
        %345 = sbr.rel (%p342) target = $region12
      $region11: #{tpu_custom_call.1} parent=5 // pred_region
        %s346 = ssub.s32 %s28, 1
        // Predicated region
        $region13: #{tpu_custom_call.1} parent=11 // pred_check
          %p347 = pneg %p75
        $region14: #{tpu_custom_call.1} parent=11 // pred_check_branch
          %349 = sbr.rel (%p347) target = $region16
        $region15: #{tpu_custom_call.1} parent=11 // pred_region
          %s351 = ssub.s32 6144, 6144
          %352 = vsyncadd [#allocation8], %s351
          %s353 = sshll.u32 [#allocation7], 4
          %s354 = int_to_ptr.vmem [resolvable:$true] %s353
          %359 = dma.hbm_to_vmem [thread:$0]  %s1, 6144, %s354, [#allocation8], 128, 128, 8
        $region16: #{tpu_custom_call.1} parent=11 // pred_fallthru
          _
        // Predicated region
        $region17: #{tpu_custom_call.1} parent=11 // pred_check
          %p360 = pneg %p96
        $region18: #{tpu_custom_call.1} parent=11 // pred_check_branch
          %362 = sbr.rel (%p360) target = $region20
        $region19: #{tpu_custom_call.1} parent=11 // pred_region
          _
        $region20: #{tpu_custom_call.1} parent=11 // pred_fallthru
          _
        // Predicated region
        $region21: #{tpu_custom_call.1} parent=11 // pred_check
          %p363 = pneg %p117
        $region22: #{tpu_custom_call.1} parent=11 // pred_check_branch
          %365 = sbr.rel (%p363) target = $region24
        $region23: #{tpu_custom_call.1} parent=11 // pred_region
          %s367 = ssub.s32 6144, 6144
          %368 = vsyncadd [#allocation8], %s367
          %s369 = sshll.u32 [#allocation9], 4
          %s370 = int_to_ptr.vmem [resolvable:$true] %s369
          %375 = dma.hbm_to_vmem [thread:$0]  %s3, 6144, %s370, [#allocation8], 128, 128, 8
        $region24: #{tpu_custom_call.1} parent=11 // pred_fallthru
          _
        // Predicated region
        $region25: #{tpu_custom_call.1} parent=11 // pred_check
          %p376 = pneg %p138
        $region26: #{tpu_custom_call.1} parent=11 // pred_check_branch
          %378 = sbr.rel (%p376) target = $region28
        $region27: #{tpu_custom_call.1} parent=11 // pred_region
          _
        $region28: #{tpu_custom_call.1} parent=11 // pred_fallthru
          _
        // Predicated region
        $region29: #{tpu_custom_call.1} parent=11 // pred_check
          %p379 = pneg %p159
        $region30: #{tpu_custom_call.1} parent=11 // pred_check_branch
          %381 = sbr.rel (%p379) target = $region32
        $region31: #{tpu_custom_call.1} parent=11 // pred_region
          %s383 = ssub.s32 2048, 2048
          %384 = vsyncadd [#allocation11], %s383
          %s385 = sshll.u32 [#allocation10], 4
          %s386 = int_to_ptr.vmem [resolvable:$true] %s385
          %391 = dma.hbm_to_vmem [thread:$0]  %s5, 2048, %s386, [#allocation11], 128, 128, 8
        $region32: #{tpu_custom_call.1} parent=11 // pred_fallthru
          _
        // Predicated region
        $region33: #{tpu_custom_call.1} parent=11 // pred_check
          %p392 = pneg %p180
        $region34: #{tpu_custom_call.1} parent=11 // pred_check_branch
          %394 = sbr.rel (%p392) target = $region36
        $region35: #{tpu_custom_call.1} parent=11 // pred_region
          _
        $region36: #{tpu_custom_call.1} parent=11 // pred_fallthru
          _
        // Predicated region
        $region37: #{tpu_custom_call.1} parent=11 // pred_check
          %p395 = pneg %p201
        $region38: #{tpu_custom_call.1} parent=11 // pred_check_branch
          %397 = sbr.rel (%p395) target = $region40
        $region39: #{tpu_custom_call.1} parent=11 // pred_region
          %s399 = ssub.s32 6144, 6144
          %400 = vsyncadd [#allocation11], %s399
          %s401 = sshll.u32 [#allocation12], 4
          %s402 = int_to_ptr.vmem [resolvable:$true] %s401
          %407 = dma.hbm_to_vmem [thread:$0]  %s7, 6144, %s402, [#allocation11], 128, 128, 8
        $region40: #{tpu_custom_call.1} parent=11 // pred_fallthru
          _
        // Predicated region
        $region41: #{tpu_custom_call.1} parent=11 // pred_check
          %p408 = pneg %p222
        $region42: #{tpu_custom_call.1} parent=11 // pred_check_branch
          %410 = sbr.rel (%p408) target = $region44
        $region43: #{tpu_custom_call.1} parent=11 // pred_region
          _
        $region44: #{tpu_custom_call.1} parent=11 // pred_fallthru
          _
        // Predicated region
        $region45: #{tpu_custom_call.1} parent=11 // pred_check
          %p411 = pneg %p243
        $region46: #{tpu_custom_call.1} parent=11 // pred_check_branch
          %413 = sbr.rel (%p411) target = $region48
        $region47: #{tpu_custom_call.1} parent=11 // pred_region
          %s415 = ssub.s32 6144, 6144
          %416 = vsyncadd [#allocation14], %s415
          %s417 = sshll.u32 [#allocation13], 4
          %s418 = int_to_ptr.vmem [resolvable:$true] %s417
          %423 = dma.hbm_to_vmem [thread:$0]  %s9, 6144, %s418, [#allocation14], 128, 128, 8
        $region48: #{tpu_custom_call.1} parent=11 // pred_fallthru
          _
        // Predicated region
        $region49: #{tpu_custom_call.1} parent=11 // pred_check
          %p424 = pneg %p264
        $region50: #{tpu_custom_call.1} parent=11 // pred_check_branch
          %426 = sbr.rel (%p424) target = $region52
        $region51: #{tpu_custom_call.1} parent=11 // pred_region
          _
        $region52: #{tpu_custom_call.1} parent=11 // pred_fallthru
          _
        // Predicated region
        $region53: #{tpu_custom_call.1} parent=11 // pred_check
          %p427 = pneg %p285
        $region54: #{tpu_custom_call.1} parent=11 // pred_check_branch
          %429 = sbr.rel (%p427) target = $region56
        $region55: #{tpu_custom_call.1} parent=11 // pred_region
          %s431 = ssub.s32 2048, 2048
          %432 = vsyncadd [#allocation14], %s431
          %s433 = sshll.u32 [#allocation15], 4
          %s434 = int_to_ptr.vmem [resolvable:$true] %s433
          %439 = dma.hbm_to_vmem [thread:$0]  %s11, 2048, %s434, [#allocation14], 128, 128, 8
        $region56: #{tpu_custom_call.1} parent=11 // pred_fallthru
          _
        // Predicated region
        $region57: #{tpu_custom_call.1} parent=11 // pred_check
          %p440 = pneg %p306
        $region58: #{tpu_custom_call.1} parent=11 // pred_check_branch
          %442 = sbr.rel (%p440) target = $region60
        $region59: #{tpu_custom_call.1} parent=11 // pred_region
          _
        $region60: #{tpu_custom_call.1} parent=11 // pred_fallthru
          _
      $region12: #{tpu_custom_call.1} parent=5 // pred_fallthru
        _
      %p443 = scmp.lt.s32.totalorder %s28, 2
      // Predicated region
      $region61: #{tpu_custom_call.1} parent=5 // pred_check
        %p444 = pneg %p443
      $region62: #{tpu_custom_call.1} parent=5 // pred_check_branch
        %446 = sbr.rel (%p444) target = $region64
      $region63: #{tpu_custom_call.1} parent=5 // pred_region
        // Predicated region
        $region65: #{tpu_custom_call.1} parent=63 // pred_check
          %p447 = pneg %p48
        $region66: #{tpu_custom_call.1} parent=63 // pred_check_branch
          %449 = sbr.rel (%p447) target = $region68
        $region67: #{tpu_custom_call.1} parent=63 // pred_region
          %s450 = sand.u32 %s38, 1
          %s451 = scalar_lea.sflag [#allocation5], %s450
          %s452 = sand.u32 %s38, 1
          %s453 = smul.addr %s452, 16
          %s454 = scalar_lea.vmem [#allocation4], %s453
          %s456 = ssub.s32 256, 256
          %457 = vsyncadd %s451, %s456
          %s458 = smul.addr %s28, 2
          %s459 = smul.addr %s458, 128
          %s460 = scalar_lea.hbm %s0, %s459
          %s461 = sshll.u32 %s454, 4
          %s462 = int_to_ptr.vmem [resolvable:$true] %s461
          %467 = dma.hbm_to_vmem [thread:$0]  %s460, 256, %s462, %s451, 128, 128, 8
        $region68: #{tpu_custom_call.1} parent=63 // pred_fallthru
          _
      $region64: #{tpu_custom_call.1} parent=5 // pred_fallthru
        _
      %p468 = scmp.le.s32.totalorder 1, %s28
      %p469 = scmp.lt.s32.totalorder %s28, 3
      %p470 = pnand %p468, %p469
      %p471 = pneg %p470
      // Predicated region
      $region69: #{tpu_custom_call.1} parent=5 // pred_check
        _
      $region70: #{tpu_custom_call.1} parent=5 // pred_check_branch
        %473 = sbr.rel (%p470) target = $region72
      $region71: #{tpu_custom_call.1} parent=5 // pred_region
        %s474 = ssub.s32 %s28, 1
        %s475 = sand.u32 %s41, 1
        %s476 = scalar_lea.sflag [#allocation5], %s475
        %s477 = sand.u32 %s41, 1
        %s478 = smul.addr %s477, 16
        %s479 = scalar_lea.vmem [#allocation4], %s478
        // Predicated region
        $region73: #{tpu_custom_call.1} parent=71 // pred_check
          %p480 = pneg %p54
        $region74: #{tpu_custom_call.1} parent=71 // pred_check_branch
          %482 = sbr.rel (%p480) target = $region76
        $region75: #{tpu_custom_call.1} parent=71 // pred_region
          %483 = dma.done %s476, 256
        $region76: #{tpu_custom_call.1} parent=71 // pred_fallthru
          _
        // Predicated region
        $region77: #{tpu_custom_call.1} parent=71 // pred_check
          %p484 = pneg %p75
        $region78: #{tpu_custom_call.1} parent=71 // pred_check_branch
          %486 = sbr.rel (%p484) target = $region80
        $region79: #{tpu_custom_call.1} parent=71 // pred_region
          %487 = dma.done [#allocation8], 6144
        $region80: #{tpu_custom_call.1} parent=71 // pred_fallthru
          _
        // Predicated region
        $region81: #{tpu_custom_call.1} parent=71 // pred_check
          %p488 = pneg %p117
        $region82: #{tpu_custom_call.1} parent=71 // pred_check_branch
          %490 = sbr.rel (%p488) target = $region84
        $region83: #{tpu_custom_call.1} parent=71 // pred_region
          %491 = dma.done [#allocation8], 6144
        $region84: #{tpu_custom_call.1} parent=71 // pred_fallthru
          _
        // Predicated region
        $region85: #{tpu_custom_call.1} parent=71 // pred_check
          %p492 = pneg %p159
        $region86: #{tpu_custom_call.1} parent=71 // pred_check_branch
          %494 = sbr.rel (%p492) target = $region88
        $region87: #{tpu_custom_call.1} parent=71 // pred_region
          %495 = dma.done [#allocation11], 2048
        $region88: #{tpu_custom_call.1} parent=71 // pred_fallthru
          _
        // Predicated region
        $region89: #{tpu_custom_call.1} parent=71 // pred_check
          %p496 = pneg %p201
        $region90: #{tpu_custom_call.1} parent=71 // pred_check_branch
          %498 = sbr.rel (%p496) target = $region92
        $region91: #{tpu_custom_call.1} parent=71 // pred_region
          %499 = dma.done [#allocation11], 6144
        $region92: #{tpu_custom_call.1} parent=71 // pred_fallthru
          _
        // Predicated region
        $region93: #{tpu_custom_call.1} parent=71 // pred_check
          %p500 = pneg %p243
        $region94: #{tpu_custom_call.1} parent=71 // pred_check_branch
          %502 = sbr.rel (%p500) target = $region96
        $region95: #{tpu_custom_call.1} parent=71 // pred_region
          %503 = dma.done [#allocation14], 6144
        $region96: #{tpu_custom_call.1} parent=71 // pred_fallthru
          _
        // Predicated region
        $region97: #{tpu_custom_call.1} parent=71 // pred_check
          %p504 = pneg %p285
        $region98: #{tpu_custom_call.1} parent=71 // pred_check_branch
          %506 = sbr.rel (%p504) target = $region100
        $region99: #{tpu_custom_call.1} parent=71 // pred_region
          %507 = dma.done [#allocation14], 2048
        $region100: #{tpu_custom_call.1} parent=71 // pred_fallthru
          _
        %s508 = sand.u32 %s41, 1
        %s509 = scalar_lea.sflag [#allocation5], %s508
        %s510 = sand.u32 %s41, 1
        %s511 = smul.addr %s510, 16
        %s512 = scalar_lea.vmem [#allocation4], %s511
        %p513 = pneg %p54
        %p514 = pneg %p51
        %p515 = pneg %p75
        %p516 = pneg %p72
        %p517 = pneg %p96
        %p518 = pneg %p93
        %p519 = pneg %p117
        %p520 = pneg %p114
        %p521 = pneg %p138
        %p522 = pneg %p135
        %p523 = pneg %p159
        %p524 = pneg %p156
        %p525 = pneg %p180
        %p526 = pneg %p177
        %p527 = pneg %p201
        %p528 = pneg %p198
        %p529 = pneg %p222
        %p530 = pneg %p219
        %p531 = pneg %p243
        %p532 = pneg %p240
        %p533 = pneg %p264
        %p534 = pneg %p261
        %p535 = pneg %p285
        %p536 = pneg %p282
        %p537 = pneg %p306
        %p538 = pneg %p303
        %p539 = pneg %p332
        %p540 = pneg %p329
        %s541 = sand.u32 %s319, 1
        %s542 = scalar_lea.sflag [#allocation6], %s541
        %s543 = sand.u32 %s319, 1
        %s544 = smul.addr %s543, 8
        %s545 = scalar_lea.vmem [#allocation16], %s544
        %546 = vst [vmem:[#allocation2] sm:$0x1] 0.0
        %547 = vst [vmem:[#allocation3] sm:$0x1] 0.0
        %548 = vst [vmem:[#allocation3 + $0x9] sm:$0x1] 0.0
        %v549 = vld [vmem:[%s479] ss:$2 sm:$0xff]
        %s550 = scalar_lea.vmem %s479, 1 [#allocation4]
        %v551 = vld [vmem:[%s550] ss:$2 sm:$0xff]
        %552 = vst [vmem:[#allocation2 + $0x1] sm:$0xff] %v551
        %v553 = vld [vmem:[#allocation2] sm:$0xff]
        %v554 = vld [vmem:[#allocation7] sm:$0xff]
        %v555 = vld [vmem:[#allocation7 + $0x8] sm:$0xff]
        %v556 = vld [vmem:[#allocation7 + $0x10] sm:$0xff]
        %v557 = vld [vmem:[#allocation7 + $0x18] sm:$0xff]
        %v558 = vld [vmem:[#allocation7 + $0x20] sm:$0xff]
        %v559 = vld [vmem:[#allocation7 + $0x28] sm:$0xff]
        %v560 = vld [vmem:[#allocation7 + $0x30] sm:$0xff]
        %v561 = vld [vmem:[#allocation7 + $0x38] sm:$0xff]
        %v562 = vld [vmem:[#allocation7 + $0x40] sm:$0xff]
        %v563 = vld [vmem:[#allocation7 + $0x48] sm:$0xff]
        %v564 = vld [vmem:[#allocation7 + $0x50] sm:$0xff]
        %v565 = vld [vmem:[#allocation7 + $0x58] sm:$0xff]
        %v566 = vld [vmem:[#allocation7 + $0x60] sm:$0xff]
        %v567 = vld [vmem:[#allocation7 + $0x68] sm:$0xff]
        %v568 = vld [vmem:[#allocation7 + $0x70] sm:$0xff]
        %v569 = vld [vmem:[#allocation7 + $0x78] sm:$0xff]
        %v570 = vld [vmem:[#allocation7 + $0x80] sm:$0xff]
        %v571 = vld [vmem:[#allocation7 + $0x88] sm:$0xff]
        %v572 = vld [vmem:[#allocation7 + $0x90] sm:$0xff]
        %v573 = vld [vmem:[#allocation7 + $0x98] sm:$0xff]
        %v574 = vld [vmem:[#allocation7 + $0xa0] sm:$0xff]
        %v575 = vld [vmem:[#allocation7 + $0xa8] sm:$0xff]
        %v576 = vld [vmem:[#allocation7 + $0xb0] sm:$0xff]
        %v577 = vld [vmem:[#allocation7 + $0xb8] sm:$0xff]
        %v578 = vld [vmem:[#allocation7 + $0xc0] sm:$0xff]
        %v579 = vld [vmem:[#allocation7 + $0xc8] sm:$0xff]
        %v580 = vld [vmem:[#allocation7 + $0xd0] sm:$0xff]
        %v581 = vld [vmem:[#allocation7 + $0xd8] sm:$0xff]
        %v582 = vld [vmem:[#allocation7 + $0xe0] sm:$0xff]
        %v583 = vld [vmem:[#allocation7 + $0xe8] sm:$0xff]
        %v584 = vld [vmem:[#allocation7 + $0xf0] sm:$0xff]
        %v585 = vld [vmem:[#allocation7 + $0xf8] sm:$0xff]
        %v586 = vld [vmem:[#allocation7 + $0x100] sm:$0xff]
        %v587 = vld [vmem:[#allocation7 + $0x108] sm:$0xff]
        %v588 = vld [vmem:[#allocation7 + $0x110] sm:$0xff]
        %v589 = vld [vmem:[#allocation7 + $0x118] sm:$0xff]
        %v590 = vld [vmem:[#allocation7 + $0x120] sm:$0xff]
        %v591 = vld [vmem:[#allocation7 + $0x128] sm:$0xff]
        %v592 = vld [vmem:[#allocation7 + $0x130] sm:$0xff]
        %v593 = vld [vmem:[#allocation7 + $0x138] sm:$0xff]
        %v594 = vld [vmem:[#allocation7 + $0x140] sm:$0xff]
        %v595 = vld [vmem:[#allocation7 + $0x148] sm:$0xff]
        %v596 = vld [vmem:[#allocation7 + $0x150] sm:$0xff]
        %v597 = vld [vmem:[#allocation7 + $0x158] sm:$0xff]
        %v598 = vld [vmem:[#allocation7 + $0x160] sm:$0xff]
        %v599 = vld [vmem:[#allocation7 + $0x168] sm:$0xff]
        %v600 = vld [vmem:[#allocation7 + $0x170] sm:$0xff]
        %v601 = vld [vmem:[#allocation7 + $0x178] sm:$0xff]
        %v602 = vld [vmem:[%s2] sm:$0x1]
        %v604 = vlaneseq
        %v605 = vshrl.u32 %v604, 7
        %v606 = vsub.s32 0, %v605
        %v607 = vrot.slane %v602, %v606
        %609 = vmatprep.subr.mxu0 0.0
        %610 = vmatpush1.msra.mxu0 %v569
        %611 = vmatprep.subr.mxu0 0.0
        %612 = vmatpush1.msra.mxu0 %v568
        %613 = vmatprep.subr.mxu0 0.0
        %614 = vmatpush1.msra.mxu0 %v567
        %615 = vmatprep.subr.mxu0 0.0
        %616 = vmatpush1.msra.mxu0 %v566
        %617 = vmatprep.subr.mxu0 0.0
        %618 = vmatpush1.msra.mxu0 %v565
        %619 = vmatprep.subr.mxu0 0.0
        %620 = vmatpush1.msra.mxu0 %v564
        %621 = vmatprep.subr.mxu0 0.0
        %622 = vmatpush1.msra.mxu0 %v563
        %623 = vmatprep.subr.mxu0 0.0
        %624 = vmatpush1.msra.mxu0 %v562
        %625 = vmatprep.subr.mxu0 0.0
        %626 = vmatpush1.msra.mxu0 %v561
        %627 = vmatprep.subr.mxu0 0.0
        %628 = vmatpush1.msra.mxu0 %v560
        %629 = vmatprep.subr.mxu0 0.0
        %630 = vmatpush1.msra.mxu0 %v559
        %631 = vmatprep.subr.mxu0 0.0
        %632 = vmatpush1.msra.mxu0 %v558
        %633 = vmatprep.subr.mxu0 0.0
        %634 = vmatpush1.msra.mxu0 %v557
        %635 = vmatprep.subr.mxu0 0.0
        %636 = vmatpush1.msra.mxu0 %v556
        %637 = vmatprep.subr.mxu0 0.0
        %638 = vmatpush1.msra.mxu0 %v555
        %639 = vmatprep.subr.mxu0 0.0
        %640 = vmatpush1.msra.mxu0 %v554
        %641 = vmatprep.subr.mxu0 0.0
        %642 = vmatpush2.msra.mxu0 %v585
        %643 = vmatprep.subr.mxu0 0.0
        %644 = vmatpush2.msra.mxu0 %v584
        %645 = vmatprep.subr.mxu0 0.0
        %646 = vmatpush2.msra.mxu0 %v583
        %647 = vmatprep.subr.mxu0 0.0
        %648 = vmatpush2.msra.mxu0 %v582
        %649 = vmatprep.subr.mxu0 0.0
        %650 = vmatpush2.msra.mxu0 %v581
        %651 = vmatprep.subr.mxu0 0.0
        %652 = vmatpush2.msra.mxu0 %v580
        %653 = vmatprep.subr.mxu0 0.0
        %654 = vmatpush2.msra.mxu0 %v579
        %655 = vmatprep.subr.mxu0 0.0
        %656 = vmatpush2.msra.mxu0 %v578
        %657 = vmatprep.subr.mxu0 0.0
        %658 = vmatpush2.msra.mxu0 %v577
        %659 = vmatprep.subr.mxu0 0.0
        %660 = vmatpush2.msra.mxu0 %v576
        %661 = vmatprep.subr.mxu0 0.0
        %662 = vmatpush2.msra.mxu0 %v575
        %663 = vmatprep.subr.mxu0 0.0
        %664 = vmatpush2.msra.mxu0 %v574
        %665 = vmatprep.subr.mxu0 0.0
        %666 = vmatpush2.msra.mxu0 %v573
        %667 = vmatprep.subr.mxu0 0.0
        %668 = vmatpush2.msra.mxu0 %v572
        %669 = vmatprep.subr.mxu0 0.0
        %670 = vmatpush2.msra.mxu0 %v571
        %671 = vmatprep.subr.mxu0 0.0
        %672 = vmatpush2.msra.mxu0 %v570
        %673 = vmatprep.mubr.f32.mxu0 %v549
        %674 = vmatmul.mubr.f32.gmra.mxu0 %v553
        %v675 = vpop.f32.mrf.mxu0
        %v676 = vadd.f32 %v607, %v675
        %v677 = vpop.f32.mrf.mxu0
        %678 = vdwg.mxu0
        %679 = vmatprep.subr.mxu0 0.0
        %680 = vmatpush1.msra.mxu0 %v601
        %681 = vmatprep.subr.mxu0 0.0
        %682 = vmatpush1.msra.mxu0 %v600
        %683 = vmatprep.subr.mxu0 0.0
        %684 = vmatpush1.msra.mxu0 %v599
        %685 = vmatprep.subr.mxu0 0.0
        %686 = vmatpush1.msra.mxu0 %v598
        %687 = vmatprep.subr.mxu0 0.0
        %688 = vmatpush1.msra.mxu0 %v597
        %689 = vmatprep.subr.mxu0 0.0
        %690 = vmatpush1.msra.mxu0 %v596
        %691 = vmatprep.subr.mxu0 0.0
        %692 = vmatpush1.msra.mxu0 %v595
        %693 = vmatprep.subr.mxu0 0.0
        %694 = vmatpush1.msra.mxu0 %v594
        %695 = vmatprep.subr.mxu0 0.0
        %696 = vmatpush1.msra.mxu0 %v593
        %697 = vmatprep.subr.mxu0 0.0
        %698 = vmatpush1.msra.mxu0 %v592
        %699 = vmatprep.subr.mxu0 0.0
        %700 = vmatpush1.msra.mxu0 %v591
        %701 = vmatprep.subr.mxu0 0.0
        %702 = vmatpush1.msra.mxu0 %v590
        %703 = vmatprep.subr.mxu0 0.0
        %704 = vmatpush1.msra.mxu0 %v589
        %705 = vmatprep.subr.mxu0 0.0
        %706 = vmatpush1.msra.mxu0 %v588
        %707 = vmatprep.subr.mxu0 0.0
        %708 = vmatpush1.msra.mxu0 %v587
        %709 = vmatprep.subr.mxu0 0.0
        %710 = vmatpush1.msra.mxu0 %v586
        %711 = vmatprep.subr.mxu0 0.0
        %712 = vmatpush2.msra.mxu0 0.0
        %713 = vmatprep.subr.mxu0 0.0
        %714 = vmatpush2.msra.mxu0 0.0
        %715 = vmatprep.subr.mxu0 0.0
        %716 = vmatpush2.msra.mxu0 0.0
        %717 = vmatprep.subr.mxu0 0.0
        %718 = vmatpush2.msra.mxu0 0.0
        %719 = vmatprep.subr.mxu0 0.0
        %720 = vmatpush2.msra.mxu0 0.0
        %721 = vmatprep.subr.mxu0 0.0
        %722 = vmatpush2.msra.mxu0 0.0
        %723 = vmatprep.subr.mxu0 0.0
        %724 = vmatpush2.msra.mxu0 0.0
        %725 = vmatprep.subr.mxu0 0.0
        %726 = vmatpush2.msra.mxu0 0.0
        %727 = vmatprep.subr.mxu0 0.0
        %728 = vmatpush2.msra.mxu0 0.0
        %729 = vmatprep.subr.mxu0 0.0
        %730 = vmatpush2.msra.mxu0 0.0
        %731 = vmatprep.subr.mxu0 0.0
        %732 = vmatpush2.msra.mxu0 0.0
        %733 = vmatprep.subr.mxu0 0.0
        %734 = vmatpush2.msra.mxu0 0.0
        %735 = vmatprep.subr.mxu0 0.0
        %736 = vmatpush2.msra.mxu0 0.0
        %737 = vmatprep.subr.mxu0 0.0
        %738 = vmatpush2.msra.mxu0 0.0
        %739 = vmatprep.subr.mxu0 0.0
        %740 = vmatpush2.msra.mxu0 0.0
        %741 = vmatprep.subr.mxu0 0.0
        %742 = vmatpush2.msra.mxu0 0.0
        %743 = vmatprep.mubr.f32.mxu0 0.0
        %744 = vmatmul.mubr.f32.gmra.mxu0 %v551
        %v745 = vpop.f32.mrf.mxu0
        %v746 = vadd.f32 %v676, %v745
        %v747 = vpop.f32.mrf.mxu0
        %748 = vdwg.mxu0
        %vm749 = vcmp.gt.f32.partialorder %v746, 0.0
        %v750 = vmul.f32 %v746, 0.2
        %v751 = vsel %vm749, %v746, %v750
        %752 = vst [vmem:[#allocation3 + $0x1] sm:$0xff] %v751
        %v753 = vld [vmem:[#allocation3] sm:$0xff]
        %v754 = vld [vmem:[#allocation3 + $0x1] sm:$0xff]
        %v755 = vld [vmem:[#allocation3 + $0x2] sm:$0xff]
        %v756 = vld [vmem:[#allocation9] sm:$0xff]
        %v757 = vld [vmem:[#allocation9 + $0x8] sm:$0xff]
        %v758 = vld [vmem:[#allocation9 + $0x10] sm:$0xff]
        %v759 = vld [vmem:[#allocation9 + $0x18] sm:$0xff]
        %v760 = vld [vmem:[#allocation9 + $0x20] sm:$0xff]
        %v761 = vld [vmem:[#allocation9 + $0x28] sm:$0xff]
        %v762 = vld [vmem:[#allocation9 + $0x30] sm:$0xff]
        %v763 = vld [vmem:[#allocation9 + $0x38] sm:$0xff]
        %v764 = vld [vmem:[#allocation9 + $0x40] sm:$0xff]
        %v765 = vld [vmem:[#allocation9 + $0x48] sm:$0xff]
        %v766 = vld [vmem:[#allocation9 + $0x50] sm:$0xff]
        %v767 = vld [vmem:[#allocation9 + $0x58] sm:$0xff]
        %v768 = vld [vmem:[#allocation9 + $0x60] sm:$0xff]
        %v769 = vld [vmem:[#allocation9 + $0x68] sm:$0xff]
        %v770 = vld [vmem:[#allocation9 + $0x70] sm:$0xff]
        %v771 = vld [vmem:[#allocation9 + $0x78] sm:$0xff]
        %v772 = vld [vmem:[#allocation9 + $0x80] sm:$0xff]
        %v773 = vld [vmem:[#allocation9 + $0x88] sm:$0xff]
        %v774 = vld [vmem:[#allocation9 + $0x90] sm:$0xff]
        %v775 = vld [vmem:[#allocation9 + $0x98] sm:$0xff]
        %v776 = vld [vmem:[#allocation9 + $0xa0] sm:$0xff]
        %v777 = vld [vmem:[#allocation9 + $0xa8] sm:$0xff]
        %v778 = vld [vmem:[#allocation9 + $0xb0] sm:$0xff]
        %v779 = vld [vmem:[#allocation9 + $0xb8] sm:$0xff]
        %v780 = vld [vmem:[#allocation9 + $0xc0] sm:$0xff]
        %v781 = vld [vmem:[#allocation9 + $0xc8] sm:$0xff]
        %v782 = vld [vmem:[#allocation9 + $0xd0] sm:$0xff]
        %v783 = vld [vmem:[#allocation9 + $0xd8] sm:$0xff]
        %v784 = vld [vmem:[#allocation9 + $0xe0] sm:$0xff]
        %v785 = vld [vmem:[#allocation9 + $0xe8] sm:$0xff]
        %v786 = vld [vmem:[#allocation9 + $0xf0] sm:$0xff]
        %v787 = vld [vmem:[#allocation9 + $0xf8] sm:$0xff]
        %v788 = vld [vmem:[#allocation9 + $0x100] sm:$0xff]
        %v789 = vld [vmem:[#allocation9 + $0x108] sm:$0xff]
        %v790 = vld [vmem:[#allocation9 + $0x110] sm:$0xff]
        %v791 = vld [vmem:[#allocation9 + $0x118] sm:$0xff]
        %v792 = vld [vmem:[#allocation9 + $0x120] sm:$0xff]
        %v793 = vld [vmem:[#allocation9 + $0x128] sm:$0xff]
        %v794 = vld [vmem:[#allocation9 + $0x130] sm:$0xff]
        %v795 = vld [vmem:[#allocation9 + $0x138] sm:$0xff]
        %v796 = vld [vmem:[#allocation9 + $0x140] sm:$0xff]
        %v797 = vld [vmem:[#allocation9 + $0x148] sm:$0xff]
        %v798 = vld [vmem:[#allocation9 + $0x150] sm:$0xff]
        %v799 = vld [vmem:[#allocation9 + $0x158] sm:$0xff]
        %v800 = vld [vmem:[#allocation9 + $0x160] sm:$0xff]
        %v801 = vld [vmem:[#allocation9 + $0x168] sm:$0xff]
        %v802 = vld [vmem:[#allocation9 + $0x170] sm:$0xff]
        %v803 = vld [vmem:[#allocation9 + $0x178] sm:$0xff]
        %v804 = vld [vmem:[%s4] sm:$0x1]
        %v806 = vlaneseq
        %v807 = vshrl.u32 %v806, 7
        %v808 = vsub.s32 0, %v807
        %v809 = vrot.slane %v804, %v808
        %811 = vmatprep.subr.mxu0 0.0
        %812 = vmatpush1.msra.mxu0 %v771
        %813 = vmatprep.subr.mxu0 0.0
        %814 = vmatpush1.msra.mxu0 %v770
        %815 = vmatprep.subr.mxu0 0.0
        %816 = vmatpush1.msra.mxu0 %v769
        %817 = vmatprep.subr.mxu0 0.0
        %818 = vmatpush1.msra.mxu0 %v768
        %819 = vmatprep.subr.mxu0 0.0
        %820 = vmatpush1.msra.mxu0 %v767
        %821 = vmatprep.subr.mxu0 0.0
        %822 = vmatpush1.msra.mxu0 %v766
        %823 = vmatprep.subr.mxu0 0.0
        %824 = vmatpush1.msra.mxu0 %v765
        %825 = vmatprep.subr.mxu0 0.0
        %826 = vmatpush1.msra.mxu0 %v764
        %827 = vmatprep.subr.mxu0 0.0
        %828 = vmatpush1.msra.mxu0 %v763
        %829 = vmatprep.subr.mxu0 0.0
        %830 = vmatpush1.msra.mxu0 %v762
        %831 = vmatprep.subr.mxu0 0.0
        %832 = vmatpush1.msra.mxu0 %v761
        %833 = vmatprep.subr.mxu0 0.0
        %834 = vmatpush1.msra.mxu0 %v760
        %835 = vmatprep.subr.mxu0 0.0
        %836 = vmatpush1.msra.mxu0 %v759
        %837 = vmatprep.subr.mxu0 0.0
        %838 = vmatpush1.msra.mxu0 %v758
        %839 = vmatprep.subr.mxu0 0.0
        %840 = vmatpush1.msra.mxu0 %v757
        %841 = vmatprep.subr.mxu0 0.0
        %842 = vmatpush1.msra.mxu0 %v756
        %843 = vmatprep.subr.mxu0 0.0
        %844 = vmatpush2.msra.mxu0 %v787
        %845 = vmatprep.subr.mxu0 0.0
        %846 = vmatpush2.msra.mxu0 %v786
        %847 = vmatprep.subr.mxu0 0.0
        %848 = vmatpush2.msra.mxu0 %v785
        %849 = vmatprep.subr.mxu0 0.0
        %850 = vmatpush2.msra.mxu0 %v784
        %851 = vmatprep.subr.mxu0 0.0
        %852 = vmatpush2.msra.mxu0 %v783
        %853 = vmatprep.subr.mxu0 0.0
        %854 = vmatpush2.msra.mxu0 %v782
        %855 = vmatprep.subr.mxu0 0.0
        %856 = vmatpush2.msra.mxu0 %v781
        %857 = vmatprep.subr.mxu0 0.0
        %858 = vmatpush2.msra.mxu0 %v780
        %859 = vmatprep.subr.mxu0 0.0
        %860 = vmatpush2.msra.mxu0 %v779
        %861 = vmatprep.subr.mxu0 0.0
        %862 = vmatpush2.msra.mxu0 %v778
        %863 = vmatprep.subr.mxu0 0.0
        %864 = vmatpush2.msra.mxu0 %v777
        %865 = vmatprep.subr.mxu0 0.0
        %866 = vmatpush2.msra.mxu0 %v776
        %867 = vmatprep.subr.mxu0 0.0
        %868 = vmatpush2.msra.mxu0 %v775
        %869 = vmatprep.subr.mxu0 0.0
        %870 = vmatpush2.msra.mxu0 %v774
        %871 = vmatprep.subr.mxu0 0.0
        %872 = vmatpush2.msra.mxu0 %v773
        %873 = vmatprep.subr.mxu0 0.0
        %874 = vmatpush2.msra.mxu0 %v772
        %875 = vmatprep.mubr.f32.mxu0 %v754
        %876 = vmatmul.mubr.f32.gmra.mxu0 %v753
        %v877 = vpop.f32.mrf.mxu0
        %v878 = vadd.f32 %v809, %v877
        %v879 = vpop.f32.mrf.mxu0
        %880 = vdwg.mxu0
        %881 = vmatprep.subr.mxu0 0.0
        %882 = vmatpush1.msra.mxu0 %v803
        %883 = vmatprep.subr.mxu0 0.0
        %884 = vmatpush1.msra.mxu0 %v802
        %885 = vmatprep.subr.mxu0 0.0
        %886 = vmatpush1.msra.mxu0 %v801
        %887 = vmatprep.subr.mxu0 0.0
        %888 = vmatpush1.msra.mxu0 %v800
        %889 = vmatprep.subr.mxu0 0.0
        %890 = vmatpush1.msra.mxu0 %v799
        %891 = vmatprep.subr.mxu0 0.0
        %892 = vmatpush1.msra.mxu0 %v798
        %893 = vmatprep.subr.mxu0 0.0
        %894 = vmatpush1.msra.mxu0 %v797
        %895 = vmatprep.subr.mxu0 0.0
        %896 = vmatpush1.msra.mxu0 %v796
        %897 = vmatprep.subr.mxu0 0.0
        %898 = vmatpush1.msra.mxu0 %v795
        %899 = vmatprep.subr.mxu0 0.0
        %900 = vmatpush1.msra.mxu0 %v794
        %901 = vmatprep.subr.mxu0 0.0
        %902 = vmatpush1.msra.mxu0 %v793
        %903 = vmatprep.subr.mxu0 0.0
        %904 = vmatpush1.msra.mxu0 %v792
        %905 = vmatprep.subr.mxu0 0.0
        %906 = vmatpush1.msra.mxu0 %v791
        %907 = vmatprep.subr.mxu0 0.0
        %908 = vmatpush1.msra.mxu0 %v790
        %909 = vmatprep.subr.mxu0 0.0
        %910 = vmatpush1.msra.mxu0 %v789
        %911 = vmatprep.subr.mxu0 0.0
        %912 = vmatpush1.msra.mxu0 %v788
        %913 = vmatprep.subr.mxu0 0.0
        %914 = vmatpush2.msra.mxu0 0.0
        %915 = vmatprep.subr.mxu0 0.0
        %916 = vmatpush2.msra.mxu0 0.0
        %917 = vmatprep.subr.mxu0 0.0
        %918 = vmatpush2.msra.mxu0 0.0
        %919 = vmatprep.subr.mxu0 0.0
        %920 = vmatpush2.msra.mxu0 0.0
        %921 = vmatprep.subr.mxu0 0.0
        %922 = vmatpush2.msra.mxu0 0.0
        %923 = vmatprep.subr.mxu0 0.0
        %924 = vmatpush2.msra.mxu0 0.0
        %925 = vmatprep.subr.mxu0 0.0
        %926 = vmatpush2.msra.mxu0 0.0
        %927 = vmatprep.subr.mxu0 0.0
        %928 = vmatpush2.msra.mxu0 0.0
        %929 = vmatprep.subr.mxu0 0.0
        %930 = vmatpush2.msra.mxu0 0.0
        %931 = vmatprep.subr.mxu0 0.0
        %932 = vmatpush2.msra.mxu0 0.0
        %933 = vmatprep.subr.mxu0 0.0
        %934 = vmatpush2.msra.mxu0 0.0
        %935 = vmatprep.subr.mxu0 0.0
        %936 = vmatpush2.msra.mxu0 0.0
        %937 = vmatprep.subr.mxu0 0.0
        %938 = vmatpush2.msra.mxu0 0.0
        %939 = vmatprep.subr.mxu0 0.0
        %940 = vmatpush2.msra.mxu0 0.0
        %941 = vmatprep.subr.mxu0 0.0
        %942 = vmatpush2.msra.mxu0 0.0
        %943 = vmatprep.subr.mxu0 0.0
        %944 = vmatpush2.msra.mxu0 0.0
        %945 = vmatprep.mubr.f32.mxu0 0.0
        %946 = vmatmul.mubr.f32.gmra.mxu0 %v755
        %v947 = vpop.f32.mrf.mxu0
        %v948 = vadd.f32 %v878, %v947
        %v949 = vpop.f32.mrf.mxu0
        %950 = vdwg.mxu0
        %v951 = vld [vmem:[#allocation10] sm:$0xff]
        %v952 = vld [vmem:[#allocation10 + $0x8] sm:$0xff]
        %v953 = vld [vmem:[#allocation10 + $0x10] sm:$0xff]
        %v954 = vld [vmem:[#allocation10 + $0x18] sm:$0xff]
        %v955 = vld [vmem:[#allocation10 + $0x20] sm:$0xff]
        %v956 = vld [vmem:[#allocation10 + $0x28] sm:$0xff]
        %v957 = vld [vmem:[#allocation10 + $0x30] sm:$0xff]
        %v958 = vld [vmem:[#allocation10 + $0x38] sm:$0xff]
        %v959 = vld [vmem:[#allocation10 + $0x40] sm:$0xff]
        %v960 = vld [vmem:[#allocation10 + $0x48] sm:$0xff]
        %v961 = vld [vmem:[#allocation10 + $0x50] sm:$0xff]
        %v962 = vld [vmem:[#allocation10 + $0x58] sm:$0xff]
        %v963 = vld [vmem:[#allocation10 + $0x60] sm:$0xff]
        %v964 = vld [vmem:[#allocation10 + $0x68] sm:$0xff]
        %v965 = vld [vmem:[#allocation10 + $0x70] sm:$0xff]
        %v966 = vld [vmem:[#allocation10 + $0x78] sm:$0xff]
        %v967 = vld [vmem:[%s6] sm:$0x1]
        %v969 = vlaneseq
        %v970 = vshrl.u32 %v969, 7
        %v971 = vsub.s32 0, %v970
        %v972 = vrot.slane %v967, %v971
        %974 = vmatprep.subr.mxu0 0.0
        %975 = vmatpush1.msra.mxu0 %v966
        %976 = vmatprep.subr.mxu0 0.0
        %977 = vmatpush1.msra.mxu0 %v965
        %978 = vmatprep.subr.mxu0 0.0
        %979 = vmatpush1.msra.mxu0 %v964
        %980 = vmatprep.subr.mxu0 0.0
        %981 = vmatpush1.msra.mxu0 %v963
        %982 = vmatprep.subr.mxu0 0.0
        %983 = vmatpush1.msra.mxu0 %v962
        %984 = vmatprep.subr.mxu0 0.0
        %985 = vmatpush1.msra.mxu0 %v961
        %986 = vmatprep.subr.mxu0 0.0
        %987 = vmatpush1.msra.mxu0 %v960
        %988 = vmatprep.subr.mxu0 0.0
        %989 = vmatpush1.msra.mxu0 %v959
        %990 = vmatprep.subr.mxu0 0.0
        %991 = vmatpush1.msra.mxu0 %v958
        %992 = vmatprep.subr.mxu0 0.0
        %993 = vmatpush1.msra.mxu0 %v957
        %994 = vmatprep.subr.mxu0 0.0
        %995 = vmatpush1.msra.mxu0 %v956
        %996 = vmatprep.subr.mxu0 0.0
        %997 = vmatpush1.msra.mxu0 %v955
        %998 = vmatprep.subr.mxu0 0.0
        %999 = vmatpush1.msra.mxu0 %v954
        %1000 = vmatprep.subr.mxu0 0.0
        %1001 = vmatpush1.msra.mxu0 %v953
        %1002 = vmatprep.subr.mxu0 0.0
        %1003 = vmatpush1.msra.mxu0 %v952
        %1004 = vmatprep.subr.mxu0 0.0
        %1005 = vmatpush1.msra.mxu0 %v951
        %1006 = vmatprep.subr.mxu0 0.0
        %1007 = vmatpush2.msra.mxu0 0.0
        %1008 = vmatprep.subr.mxu0 0.0
        %1009 = vmatpush2.msra.mxu0 0.0
        %1010 = vmatprep.subr.mxu0 0.0
        %1011 = vmatpush2.msra.mxu0 0.0
        %1012 = vmatprep.subr.mxu0 0.0
        %1013 = vmatpush2.msra.mxu0 0.0
        %1014 = vmatprep.subr.mxu0 0.0
        %1015 = vmatpush2.msra.mxu0 0.0
        %1016 = vmatprep.subr.mxu0 0.0
        %1017 = vmatpush2.msra.mxu0 0.0
        %1018 = vmatprep.subr.mxu0 0.0
        %1019 = vmatpush2.msra.mxu0 0.0
        %1020 = vmatprep.subr.mxu0 0.0
        %1021 = vmatpush2.msra.mxu0 0.0
        %1022 = vmatprep.subr.mxu0 0.0
        %1023 = vmatpush2.msra.mxu0 0.0
        %1024 = vmatprep.subr.mxu0 0.0
        %1025 = vmatpush2.msra.mxu0 0.0
        %1026 = vmatprep.subr.mxu0 0.0
        %1027 = vmatpush2.msra.mxu0 0.0
        %1028 = vmatprep.subr.mxu0 0.0
        %1029 = vmatpush2.msra.mxu0 0.0
        %1030 = vmatprep.subr.mxu0 0.0
        %1031 = vmatpush2.msra.mxu0 0.0
        %1032 = vmatprep.subr.mxu0 0.0
        %1033 = vmatpush2.msra.mxu0 0.0
        %1034 = vmatprep.subr.mxu0 0.0
        %1035 = vmatpush2.msra.mxu0 0.0
        %1036 = vmatprep.subr.mxu0 0.0
        %1037 = vmatpush2.msra.mxu0 0.0
        %1038 = vmatprep.mubr.f32.mxu0 0.0
        %1039 = vmatmul.mubr.f32.gmra.mxu0 %v549
        %v1040 = vpop.f32.mrf.mxu0
        %v1041 = vadd.f32 %v972, %v1040
        %v1042 = vpop.f32.mrf.mxu0
        %1043 = vdwg.mxu0
        %v1044 = vadd.f32 %v948, %v1041
        %1045 = vst [vmem:[#allocation3 + $0x1] sm:$0xff] %v1044
        %v1046 = vld [vmem:[#allocation3] sm:$0xff]
        %v1047 = vld [vmem:[#allocation3 + $0x1] sm:$0xff]
        %v1048 = vld [vmem:[#allocation3 + $0x2] sm:$0xff]
        %v1049 = vld [vmem:[#allocation12] sm:$0xff]
        %v1050 = vld [vmem:[#allocation12 + $0x8] sm:$0xff]
        %v1051 = vld [vmem:[#allocation12 + $0x10] sm:$0xff]
        %v1052 = vld [vmem:[#allocation12 + $0x18] sm:$0xff]
        %v1053 = vld [vmem:[#allocation12 + $0x20] sm:$0xff]
        %v1054 = vld [vmem:[#allocation12 + $0x28] sm:$0xff]
        %v1055 = vld [vmem:[#allocation12 + $0x30] sm:$0xff]
        %v1056 = vld [vmem:[#allocation12 + $0x38] sm:$0xff]
        %v1057 = vld [vmem:[#allocation12 + $0x40] sm:$0xff]
        %v1058 = vld [vmem:[#allocation12 + $0x48] sm:$0xff]
        %v1059 = vld [vmem:[#allocation12 + $0x50] sm:$0xff]
        %v1060 = vld [vmem:[#allocation12 + $0x58] sm:$0xff]
        %v1061 = vld [vmem:[#allocation12 + $0x60] sm:$0xff]
        %v1062 = vld [vmem:[#allocation12 + $0x68] sm:$0xff]
        %v1063 = vld [vmem:[#allocation12 + $0x70] sm:$0xff]
        %v1064 = vld [vmem:[#allocation12 + $0x78] sm:$0xff]
        %v1065 = vld [vmem:[#allocation12 + $0x80] sm:$0xff]
        %v1066 = vld [vmem:[#allocation12 + $0x88] sm:$0xff]
        %v1067 = vld [vmem:[#allocation12 + $0x90] sm:$0xff]
        %v1068 = vld [vmem:[#allocation12 + $0x98] sm:$0xff]
        %v1069 = vld [vmem:[#allocation12 + $0xa0] sm:$0xff]
        %v1070 = vld [vmem:[#allocation12 + $0xa8] sm:$0xff]
        %v1071 = vld [vmem:[#allocation12 + $0xb0] sm:$0xff]
        %v1072 = vld [vmem:[#allocation12 + $0xb8] sm:$0xff]
        %v1073 = vld [vmem:[#allocation12 + $0xc0] sm:$0xff]
        %v1074 = vld [vmem:[#allocation12 + $0xc8] sm:$0xff]
        %v1075 = vld [vmem:[#allocation12 + $0xd0] sm:$0xff]
        %v1076 = vld [vmem:[#allocation12 + $0xd8] sm:$0xff]
        %v1077 = vld [vmem:[#allocation12 + $0xe0] sm:$0xff]
        %v1078 = vld [vmem:[#allocation12 + $0xe8] sm:$0xff]
        %v1079 = vld [vmem:[#allocation12 + $0xf0] sm:$0xff]
        %v1080 = vld [vmem:[#allocation12 + $0xf8] sm:$0xff]
        %v1081 = vld [vmem:[#allocation12 + $0x100] sm:$0xff]
        %v1082 = vld [vmem:[#allocation12 + $0x108] sm:$0xff]
        %v1083 = vld [vmem:[#allocation12 + $0x110] sm:$0xff]
        %v1084 = vld [vmem:[#allocation12 + $0x118] sm:$0xff]
        %v1085 = vld [vmem:[#allocation12 + $0x120] sm:$0xff]
        %v1086 = vld [vmem:[#allocation12 + $0x128] sm:$0xff]
        %v1087 = vld [vmem:[#allocation12 + $0x130] sm:$0xff]
        %v1088 = vld [vmem:[#allocation12 + $0x138] sm:$0xff]
        %v1089 = vld [vmem:[#allocation12 + $0x140] sm:$0xff]
        %v1090 = vld [vmem:[#allocation12 + $0x148] sm:$0xff]
        %v1091 = vld [vmem:[#allocation12 + $0x150] sm:$0xff]
        %v1092 = vld [vmem:[#allocation12 + $0x158] sm:$0xff]
        %v1093 = vld [vmem:[#allocation12 + $0x160] sm:$0xff]
        %v1094 = vld [vmem:[#allocation12 + $0x168] sm:$0xff]
        %v1095 = vld [vmem:[#allocation12 + $0x170] sm:$0xff]
        %v1096 = vld [vmem:[#allocation12 + $0x178] sm:$0xff]
        %v1097 = vld [vmem:[%s8] sm:$0x1]
        %v1099 = vlaneseq
        %v1100 = vshrl.u32 %v1099, 7
        %v1101 = vsub.s32 0, %v1100
        %v1102 = vrot.slane %v1097, %v1101
        %1104 = vmatprep.subr.mxu0 0.0
        %1105 = vmatpush1.msra.mxu0 %v1064
        %1106 = vmatprep.subr.mxu0 0.0
        %1107 = vmatpush1.msra.mxu0 %v1063
        %1108 = vmatprep.subr.mxu0 0.0
        %1109 = vmatpush1.msra.mxu0 %v1062
        %1110 = vmatprep.subr.mxu0 0.0
        %1111 = vmatpush1.msra.mxu0 %v1061
        %1112 = vmatprep.subr.mxu0 0.0
        %1113 = vmatpush1.msra.mxu0 %v1060
        %1114 = vmatprep.subr.mxu0 0.0
        %1115 = vmatpush1.msra.mxu0 %v1059
        %1116 = vmatprep.subr.mxu0 0.0
        %1117 = vmatpush1.msra.mxu0 %v1058
        %1118 = vmatprep.subr.mxu0 0.0
        %1119 = vmatpush1.msra.mxu0 %v1057
        %1120 = vmatprep.subr.mxu0 0.0
        %1121 = vmatpush1.msra.mxu0 %v1056
        %1122 = vmatprep.subr.mxu0 0.0
        %1123 = vmatpush1.msra.mxu0 %v1055
        %1124 = vmatprep.subr.mxu0 0.0
        %1125 = vmatpush1.msra.mxu0 %v1054
        %1126 = vmatprep.subr.mxu0 0.0
        %1127 = vmatpush1.msra.mxu0 %v1053
        %1128 = vmatprep.subr.mxu0 0.0
        %1129 = vmatpush1.msra.mxu0 %v1052
        %1130 = vmatprep.subr.mxu0 0.0
        %1131 = vmatpush1.msra.mxu0 %v1051
        %1132 = vmatprep.subr.mxu0 0.0
        %1133 = vmatpush1.msra.mxu0 %v1050
        %1134 = vmatprep.subr.mxu0 0.0
        %1135 = vmatpush1.msra.mxu0 %v1049
        %1136 = vmatprep.subr.mxu0 0.0
        %1137 = vmatpush2.msra.mxu0 %v1080
        %1138 = vmatprep.subr.mxu0 0.0
        %1139 = vmatpush2.msra.mxu0 %v1079
        %1140 = vmatprep.subr.mxu0 0.0
        %1141 = vmatpush2.msra.mxu0 %v1078
        %1142 = vmatprep.subr.mxu0 0.0
        %1143 = vmatpush2.msra.mxu0 %v1077
        %1144 = vmatprep.subr.mxu0 0.0
        %1145 = vmatpush2.msra.mxu0 %v1076
        %1146 = vmatprep.subr.mxu0 0.0
        %1147 = vmatpush2.msra.mxu0 %v1075
        %1148 = vmatprep.subr.mxu0 0.0
        %1149 = vmatpush2.msra.mxu0 %v1074
        %1150 = vmatprep.subr.mxu0 0.0
        %1151 = vmatpush2.msra.mxu0 %v1073
        %1152 = vmatprep.subr.mxu0 0.0
        %1153 = vmatpush2.msra.mxu0 %v1072
        %1154 = vmatprep.subr.mxu0 0.0
        %1155 = vmatpush2.msra.mxu0 %v1071
        %1156 = vmatprep.subr.mxu0 0.0
        %1157 = vmatpush2.msra.mxu0 %v1070
        %1158 = vmatprep.subr.mxu0 0.0
        %1159 = vmatpush2.msra.mxu0 %v1069
        %1160 = vmatprep.subr.mxu0 0.0
        %1161 = vmatpush2.msra.mxu0 %v1068
        %1162 = vmatprep.subr.mxu0 0.0
        %1163 = vmatpush2.msra.mxu0 %v1067
        %1164 = vmatprep.subr.mxu0 0.0
        %1165 = vmatpush2.msra.mxu0 %v1066
        %1166 = vmatprep.subr.mxu0 0.0
        %1167 = vmatpush2.msra.mxu0 %v1065
        %1168 = vmatprep.mubr.f32.mxu0 %v1047
        %1169 = vmatmul.mubr.f32.gmra.mxu0 %v1046
        %v1170 = vpop.f32.mrf.mxu0
        %v1171 = vadd.f32 %v1102, %v1170
        %v1172 = vpop.f32.mrf.mxu0
        %1173 = vdwg.mxu0
        %1174 = vmatprep.subr.mxu0 0.0
        %1175 = vmatpush1.msra.mxu0 %v1096
        %1176 = vmatprep.subr.mxu0 0.0
        %1177 = vmatpush1.msra.mxu0 %v1095
        %1178 = vmatprep.subr.mxu0 0.0
        %1179 = vmatpush1.msra.mxu0 %v1094
        %1180 = vmatprep.subr.mxu0 0.0
        %1181 = vmatpush1.msra.mxu0 %v1093
        %1182 = vmatprep.subr.mxu0 0.0
        %1183 = vmatpush1.msra.mxu0 %v1092
        %1184 = vmatprep.subr.mxu0 0.0
        %1185 = vmatpush1.msra.mxu0 %v1091
        %1186 = vmatprep.subr.mxu0 0.0
        %1187 = vmatpush1.msra.mxu0 %v1090
        %1188 = vmatprep.subr.mxu0 0.0
        %1189 = vmatpush1.msra.mxu0 %v1089
        %1190 = vmatprep.subr.mxu0 0.0
        %1191 = vmatpush1.msra.mxu0 %v1088
        %1192 = vmatprep.subr.mxu0 0.0
        %1193 = vmatpush1.msra.mxu0 %v1087
        %1194 = vmatprep.subr.mxu0 0.0
        %1195 = vmatpush1.msra.mxu0 %v1086
        %1196 = vmatprep.subr.mxu0 0.0
        %1197 = vmatpush1.msra.mxu0 %v1085
        %1198 = vmatprep.subr.mxu0 0.0
        %1199 = vmatpush1.msra.mxu0 %v1084
        %1200 = vmatprep.subr.mxu0 0.0
        %1201 = vmatpush1.msra.mxu0 %v1083
        %1202 = vmatprep.subr.mxu0 0.0
        %1203 = vmatpush1.msra.mxu0 %v1082
        %1204 = vmatprep.subr.mxu0 0.0
        %1205 = vmatpush1.msra.mxu0 %v1081
        %1206 = vmatprep.subr.mxu0 0.0
        %1207 = vmatpush2.msra.mxu0 0.0
        %1208 = vmatprep.subr.mxu0 0.0
        %1209 = vmatpush2.msra.mxu0 0.0
        %1210 = vmatprep.subr.mxu0 0.0
        %1211 = vmatpush2.msra.mxu0 0.0
        %1212 = vmatprep.subr.mxu0 0.0
        %1213 = vmatpush2.msra.mxu0 0.0
        %1214 = vmatprep.subr.mxu0 0.0
        %1215 = vmatpush2.msra.mxu0 0.0
        %1216 = vmatprep.subr.mxu0 0.0
        %1217 = vmatpush2.msra.mxu0 0.0
        %1218 = vmatprep.subr.mxu0 0.0
        %1219 = vmatpush2.msra.mxu0 0.0
        %1220 = vmatprep.subr.mxu0 0.0
        %1221 = vmatpush2.msra.mxu0 0.0
        %1222 = vmatprep.subr.mxu0 0.0
        %1223 = vmatpush2.msra.mxu0 0.0
        %1224 = vmatprep.subr.mxu0 0.0
        %1225 = vmatpush2.msra.mxu0 0.0
        %1226 = vmatprep.subr.mxu0 0.0
        %1227 = vmatpush2.msra.mxu0 0.0
        %1228 = vmatprep.subr.mxu0 0.0
        %1229 = vmatpush2.msra.mxu0 0.0
        %1230 = vmatprep.subr.mxu0 0.0
        %1231 = vmatpush2.msra.mxu0 0.0
        %1232 = vmatprep.subr.mxu0 0.0
        %1233 = vmatpush2.msra.mxu0 0.0
        %1234 = vmatprep.subr.mxu0 0.0
        %1235 = vmatpush2.msra.mxu0 0.0
        %1236 = vmatprep.subr.mxu0 0.0
        %1237 = vmatpush2.msra.mxu0 0.0
        %1238 = vmatprep.mubr.f32.mxu0 0.0
        %1239 = vmatmul.mubr.f32.gmra.mxu0 %v1048
        %v1240 = vpop.f32.mrf.mxu0
        %v1241 = vadd.f32 %v1171, %v1240
        %v1242 = vpop.f32.mrf.mxu0
        %1243 = vdwg.mxu0
        %vm1244 = vcmp.gt.f32.partialorder %v1241, 0.0
        %v1245 = vmul.f32 %v1241, 0.2
        %v1246 = vsel %vm1244, %v1241, %v1245
        %1247 = vst [vmem:[#allocation3 + $0x1] sm:$0xff] %v1246
        %v1248 = vld [vmem:[#allocation3] sm:$0xff]
        %v1249 = vld [vmem:[#allocation3 + $0x1] sm:$0xff]
        %v1250 = vld [vmem:[#allocation3 + $0x2] sm:$0xff]
        %v1251 = vld [vmem:[#allocation13] sm:$0xff]
        %v1252 = vld [vmem:[#allocation13 + $0x8] sm:$0xff]
        %v1253 = vld [vmem:[#allocation13 + $0x10] sm:$0xff]
        %v1254 = vld [vmem:[#allocation13 + $0x18] sm:$0xff]
        %v1255 = vld [vmem:[#allocation13 + $0x20] sm:$0xff]
        %v1256 = vld [vmem:[#allocation13 + $0x28] sm:$0xff]
        %v1257 = vld [vmem:[#allocation13 + $0x30] sm:$0xff]
        %v1258 = vld [vmem:[#allocation13 + $0x38] sm:$0xff]
        %v1259 = vld [vmem:[#allocation13 + $0x40] sm:$0xff]
        %v1260 = vld [vmem:[#allocation13 + $0x48] sm:$0xff]
        %v1261 = vld [vmem:[#allocation13 + $0x50] sm:$0xff]
        %v1262 = vld [vmem:[#allocation13 + $0x58] sm:$0xff]
        %v1263 = vld [vmem:[#allocation13 + $0x60] sm:$0xff]
        %v1264 = vld [vmem:[#allocation13 + $0x68] sm:$0xff]
        %v1265 = vld [vmem:[#allocation13 + $0x70] sm:$0xff]
        %v1266 = vld [vmem:[#allocation13 + $0x78] sm:$0xff]
        %v1267 = vld [vmem:[#allocation13 + $0x80] sm:$0xff]
        %v1268 = vld [vmem:[#allocation13 + $0x88] sm:$0xff]
        %v1269 = vld [vmem:[#allocation13 + $0x90] sm:$0xff]
        %v1270 = vld [vmem:[#allocation13 + $0x98] sm:$0xff]
        %v1271 = vld [vmem:[#allocation13 + $0xa0] sm:$0xff]
        %v1272 = vld [vmem:[#allocation13 + $0xa8] sm:$0xff]
        %v1273 = vld [vmem:[#allocation13 + $0xb0] sm:$0xff]
        %v1274 = vld [vmem:[#allocation13 + $0xb8] sm:$0xff]
        %v1275 = vld [vmem:[#allocation13 + $0xc0] sm:$0xff]
        %v1276 = vld [vmem:[#allocation13 + $0xc8] sm:$0xff]
        %v1277 = vld [vmem:[#allocation13 + $0xd0] sm:$0xff]
        %v1278 = vld [vmem:[#allocation13 + $0xd8] sm:$0xff]
        %v1279 = vld [vmem:[#allocation13 + $0xe0] sm:$0xff]
        %v1280 = vld [vmem:[#allocation13 + $0xe8] sm:$0xff]
        %v1281 = vld [vmem:[#allocation13 + $0xf0] sm:$0xff]
        %v1282 = vld [vmem:[#allocation13 + $0xf8] sm:$0xff]
        %v1283 = vld [vmem:[#allocation13 + $0x100] sm:$0xff]
        %v1284 = vld [vmem:[#allocation13 + $0x108] sm:$0xff]
        %v1285 = vld [vmem:[#allocation13 + $0x110] sm:$0xff]
        %v1286 = vld [vmem:[#allocation13 + $0x118] sm:$0xff]
        %v1287 = vld [vmem:[#allocation13 + $0x120] sm:$0xff]
        %v1288 = vld [vmem:[#allocation13 + $0x128] sm:$0xff]
        %v1289 = vld [vmem:[#allocation13 + $0x130] sm:$0xff]
        %v1290 = vld [vmem:[#allocation13 + $0x138] sm:$0xff]
        %v1291 = vld [vmem:[#allocation13 + $0x140] sm:$0xff]
        %v1292 = vld [vmem:[#allocation13 + $0x148] sm:$0xff]
        %v1293 = vld [vmem:[#allocation13 + $0x150] sm:$0xff]
        %v1294 = vld [vmem:[#allocation13 + $0x158] sm:$0xff]
        %v1295 = vld [vmem:[#allocation13 + $0x160] sm:$0xff]
        %v1296 = vld [vmem:[#allocation13 + $0x168] sm:$0xff]
        %v1297 = vld [vmem:[#allocation13 + $0x170] sm:$0xff]
        %v1298 = vld [vmem:[#allocation13 + $0x178] sm:$0xff]
        %v1299 = vld [vmem:[%s10] sm:$0x1]
        %v1301 = vlaneseq
        %v1302 = vshrl.u32 %v1301, 7
        %v1303 = vsub.s32 0, %v1302
        %v1304 = vrot.slane %v1299, %v1303
        %1306 = vmatprep.subr.mxu0 0.0
        %1307 = vmatpush1.msra.mxu0 %v1266
        %1308 = vmatprep.subr.mxu0 0.0
        %1309 = vmatpush1.msra.mxu0 %v1265
        %1310 = vmatprep.subr.mxu0 0.0
        %1311 = vmatpush1.msra.mxu0 %v1264
        %1312 = vmatprep.subr.mxu0 0.0
        %1313 = vmatpush1.msra.mxu0 %v1263
        %1314 = vmatprep.subr.mxu0 0.0
        %1315 = vmatpush1.msra.mxu0 %v1262
        %1316 = vmatprep.subr.mxu0 0.0
        %1317 = vmatpush1.msra.mxu0 %v1261
        %1318 = vmatprep.subr.mxu0 0.0
        %1319 = vmatpush1.msra.mxu0 %v1260
        %1320 = vmatprep.subr.mxu0 0.0
        %1321 = vmatpush1.msra.mxu0 %v1259
        %1322 = vmatprep.subr.mxu0 0.0
        %1323 = vmatpush1.msra.mxu0 %v1258
        %1324 = vmatprep.subr.mxu0 0.0
        %1325 = vmatpush1.msra.mxu0 %v1257
        %1326 = vmatprep.subr.mxu0 0.0
        %1327 = vmatpush1.msra.mxu0 %v1256
        %1328 = vmatprep.subr.mxu0 0.0
        %1329 = vmatpush1.msra.mxu0 %v1255
        %1330 = vmatprep.subr.mxu0 0.0
        %1331 = vmatpush1.msra.mxu0 %v1254
        %1332 = vmatprep.subr.mxu0 0.0
        %1333 = vmatpush1.msra.mxu0 %v1253
        %1334 = vmatprep.subr.mxu0 0.0
        %1335 = vmatpush1.msra.mxu0 %v1252
        %1336 = vmatprep.subr.mxu0 0.0
        %1337 = vmatpush1.msra.mxu0 %v1251
        %1338 = vmatprep.subr.mxu0 0.0
        %1339 = vmatpush2.msra.mxu0 %v1282
        %1340 = vmatprep.subr.mxu0 0.0
        %1341 = vmatpush2.msra.mxu0 %v1281
        %1342 = vmatprep.subr.mxu0 0.0
        %1343 = vmatpush2.msra.mxu0 %v1280
        %1344 = vmatprep.subr.mxu0 0.0
        %1345 = vmatpush2.msra.mxu0 %v1279
        %1346 = vmatprep.subr.mxu0 0.0
        %1347 = vmatpush2.msra.mxu0 %v1278
        %1348 = vmatprep.subr.mxu0 0.0
        %1349 = vmatpush2.msra.mxu0 %v1277
        %1350 = vmatprep.subr.mxu0 0.0
        %1351 = vmatpush2.msra.mxu0 %v1276
        %1352 = vmatprep.subr.mxu0 0.0
        %1353 = vmatpush2.msra.mxu0 %v1275
        %1354 = vmatprep.subr.mxu0 0.0
        %1355 = vmatpush2.msra.mxu0 %v1274
        %1356 = vmatprep.subr.mxu0 0.0
        %1357 = vmatpush2.msra.mxu0 %v1273
        %1358 = vmatprep.subr.mxu0 0.0
        %1359 = vmatpush2.msra.mxu0 %v1272
        %1360 = vmatprep.subr.mxu0 0.0
        %1361 = vmatpush2.msra.mxu0 %v1271
        %1362 = vmatprep.subr.mxu0 0.0
        %1363 = vmatpush2.msra.mxu0 %v1270
        %1364 = vmatprep.subr.mxu0 0.0
        %1365 = vmatpush2.msra.mxu0 %v1269
        %1366 = vmatprep.subr.mxu0 0.0
        %1367 = vmatpush2.msra.mxu0 %v1268
        %1368 = vmatprep.subr.mxu0 0.0
        %1369 = vmatpush2.msra.mxu0 %v1267
        %1370 = vmatprep.mubr.f32.mxu0 %v1249
        %1371 = vmatmul.mubr.f32.gmra.mxu0 %v1248
        %v1372 = vpop.f32.mrf.mxu0
        %v1373 = vadd.f32 %v1304, %v1372
        %v1374 = vpop.f32.mrf.mxu0
        %1375 = vdwg.mxu0
        %1376 = vmatprep.subr.mxu0 0.0
        %1377 = vmatpush1.msra.mxu0 %v1298
        %1378 = vmatprep.subr.mxu0 0.0
        %1379 = vmatpush1.msra.mxu0 %v1297
        %1380 = vmatprep.subr.mxu0 0.0
        %1381 = vmatpush1.msra.mxu0 %v1296
        %1382 = vmatprep.subr.mxu0 0.0
        %1383 = vmatpush1.msra.mxu0 %v1295
        %1384 = vmatprep.subr.mxu0 0.0
        %1385 = vmatpush1.msra.mxu0 %v1294
        %1386 = vmatprep.subr.mxu0 0.0
        %1387 = vmatpush1.msra.mxu0 %v1293
        %1388 = vmatprep.subr.mxu0 0.0
        %1389 = vmatpush1.msra.mxu0 %v1292
        %1390 = vmatprep.subr.mxu0 0.0
        %1391 = vmatpush1.msra.mxu0 %v1291
        %1392 = vmatprep.subr.mxu0 0.0
        %1393 = vmatpush1.msra.mxu0 %v1290
        %1394 = vmatprep.subr.mxu0 0.0
        %1395 = vmatpush1.msra.mxu0 %v1289
        %1396 = vmatprep.subr.mxu0 0.0
        %1397 = vmatpush1.msra.mxu0 %v1288
        %1398 = vmatprep.subr.mxu0 0.0
        %1399 = vmatpush1.msra.mxu0 %v1287
        %1400 = vmatprep.subr.mxu0 0.0
        %1401 = vmatpush1.msra.mxu0 %v1286
        %1402 = vmatprep.subr.mxu0 0.0
        %1403 = vmatpush1.msra.mxu0 %v1285
        %1404 = vmatprep.subr.mxu0 0.0
        %1405 = vmatpush1.msra.mxu0 %v1284
        %1406 = vmatprep.subr.mxu0 0.0
        %1407 = vmatpush1.msra.mxu0 %v1283
        %1408 = vmatprep.subr.mxu0 0.0
        %1409 = vmatpush2.msra.mxu0 0.0
        %1410 = vmatprep.subr.mxu0 0.0
        %1411 = vmatpush2.msra.mxu0 0.0
        %1412 = vmatprep.subr.mxu0 0.0
        %1413 = vmatpush2.msra.mxu0 0.0
        %1414 = vmatprep.subr.mxu0 0.0
        %1415 = vmatpush2.msra.mxu0 0.0
        %1416 = vmatprep.subr.mxu0 0.0
        %1417 = vmatpush2.msra.mxu0 0.0
        %1418 = vmatprep.subr.mxu0 0.0
        %1419 = vmatpush2.msra.mxu0 0.0
        %1420 = vmatprep.subr.mxu0 0.0
        %1421 = vmatpush2.msra.mxu0 0.0
        %1422 = vmatprep.subr.mxu0 0.0
        %1423 = vmatpush2.msra.mxu0 0.0
        %1424 = vmatprep.subr.mxu0 0.0
        %1425 = vmatpush2.msra.mxu0 0.0
        %1426 = vmatprep.subr.mxu0 0.0
        %1427 = vmatpush2.msra.mxu0 0.0
        %1428 = vmatprep.subr.mxu0 0.0
        %1429 = vmatpush2.msra.mxu0 0.0
        %1430 = vmatprep.subr.mxu0 0.0
        %1431 = vmatpush2.msra.mxu0 0.0
        %1432 = vmatprep.subr.mxu0 0.0
        %1433 = vmatpush2.msra.mxu0 0.0
        %1434 = vmatprep.subr.mxu0 0.0
        %1435 = vmatpush2.msra.mxu0 0.0
        %1436 = vmatprep.subr.mxu0 0.0
        %1437 = vmatpush2.msra.mxu0 0.0
        %1438 = vmatprep.subr.mxu0 0.0
        %1439 = vmatpush2.msra.mxu0 0.0
        %1440 = vmatprep.mubr.f32.mxu0 0.0
        %1441 = vmatmul.mubr.f32.gmra.mxu0 %v1250
        %v1442 = vpop.f32.mrf.mxu0
        %v1443 = vadd.f32 %v1373, %v1442
        %v1444 = vpop.f32.mrf.mxu0
        %1445 = vdwg.mxu0
        %v1446 = vld [vmem:[#allocation15] sm:$0xff]
        %v1447 = vld [vmem:[#allocation15 + $0x8] sm:$0xff]
        %v1448 = vld [vmem:[#allocation15 + $0x10] sm:$0xff]
        %v1449 = vld [vmem:[#allocation15 + $0x18] sm:$0xff]
        %v1450 = vld [vmem:[#allocation15 + $0x20] sm:$0xff]
        %v1451 = vld [vmem:[#allocation15 + $0x28] sm:$0xff]
        %v1452 = vld [vmem:[#allocation15 + $0x30] sm:$0xff]
        %v1453 = vld [vmem:[#allocation15 + $0x38] sm:$0xff]
        %v1454 = vld [vmem:[#allocation15 + $0x40] sm:$0xff]
        %v1455 = vld [vmem:[#allocation15 + $0x48] sm:$0xff]
        %v1456 = vld [vmem:[#allocation15 + $0x50] sm:$0xff]
        %v1457 = vld [vmem:[#allocation15 + $0x58] sm:$0xff]
        %v1458 = vld [vmem:[#allocation15 + $0x60] sm:$0xff]
        %v1459 = vld [vmem:[#allocation15 + $0x68] sm:$0xff]
        %v1460 = vld [vmem:[#allocation15 + $0x70] sm:$0xff]
        %v1461 = vld [vmem:[#allocation15 + $0x78] sm:$0xff]
        %v1462 = vld [vmem:[%s12] sm:$0x1]
        %v1464 = vlaneseq
        %v1465 = vshrl.u32 %v1464, 7
        %v1466 = vsub.s32 0, %v1465
        %v1467 = vrot.slane %v1462, %v1466
        %1469 = vmatprep.subr.mxu0 0.0
        %1470 = vmatpush1.msra.mxu0 %v1461
        %1471 = vmatprep.subr.mxu0 0.0
        %1472 = vmatpush1.msra.mxu0 %v1460
        %1473 = vmatprep.subr.mxu0 0.0
        %1474 = vmatpush1.msra.mxu0 %v1459
        %1475 = vmatprep.subr.mxu0 0.0
        %1476 = vmatpush1.msra.mxu0 %v1458
        %1477 = vmatprep.subr.mxu0 0.0
        %1478 = vmatpush1.msra.mxu0 %v1457
        %1479 = vmatprep.subr.mxu0 0.0
        %1480 = vmatpush1.msra.mxu0 %v1456
        %1481 = vmatprep.subr.mxu0 0.0
        %1482 = vmatpush1.msra.mxu0 %v1455
        %1483 = vmatprep.subr.mxu0 0.0
        %1484 = vmatpush1.msra.mxu0 %v1454
        %1485 = vmatprep.subr.mxu0 0.0
        %1486 = vmatpush1.msra.mxu0 %v1453
        %1487 = vmatprep.subr.mxu0 0.0
        %1488 = vmatpush1.msra.mxu0 %v1452
        %1489 = vmatprep.subr.mxu0 0.0
        %1490 = vmatpush1.msra.mxu0 %v1451
        %1491 = vmatprep.subr.mxu0 0.0
        %1492 = vmatpush1.msra.mxu0 %v1450
        %1493 = vmatprep.subr.mxu0 0.0
        %1494 = vmatpush1.msra.mxu0 %v1449
        %1495 = vmatprep.subr.mxu0 0.0
        %1496 = vmatpush1.msra.mxu0 %v1448
        %1497 = vmatprep.subr.mxu0 0.0
        %1498 = vmatpush1.msra.mxu0 %v1447
        %1499 = vmatprep.subr.mxu0 0.0
        %1500 = vmatpush1.msra.mxu0 %v1446
        %1501 = vmatprep.subr.mxu0 0.0
        %1502 = vmatpush2.msra.mxu0 0.0
        %1503 = vmatprep.subr.mxu0 0.0
        %1504 = vmatpush2.msra.mxu0 0.0
        %1505 = vmatprep.subr.mxu0 0.0
        %1506 = vmatpush2.msra.mxu0 0.0
        %1507 = vmatprep.subr.mxu0 0.0
        %1508 = vmatpush2.msra.mxu0 0.0
        %1509 = vmatprep.subr.mxu0 0.0
        %1510 = vmatpush2.msra.mxu0 0.0
        %1511 = vmatprep.subr.mxu0 0.0
        %1512 = vmatpush2.msra.mxu0 0.0
        %1513 = vmatprep.subr.mxu0 0.0
        %1514 = vmatpush2.msra.mxu0 0.0
        %1515 = vmatprep.subr.mxu0 0.0
        %1516 = vmatpush2.msra.mxu0 0.0
        %1517 = vmatprep.subr.mxu0 0.0
        %1518 = vmatpush2.msra.mxu0 0.0
        %1519 = vmatprep.subr.mxu0 0.0
        %1520 = vmatpush2.msra.mxu0 0.0
        %1521 = vmatprep.subr.mxu0 0.0
        %1522 = vmatpush2.msra.mxu0 0.0
        %1523 = vmatprep.subr.mxu0 0.0
        %1524 = vmatpush2.msra.mxu0 0.0
        %1525 = vmatprep.subr.mxu0 0.0
        %1526 = vmatpush2.msra.mxu0 0.0
        %1527 = vmatprep.subr.mxu0 0.0
        %1528 = vmatpush2.msra.mxu0 0.0
        %1529 = vmatprep.subr.mxu0 0.0
        %1530 = vmatpush2.msra.mxu0 0.0
        %1531 = vmatprep.subr.mxu0 0.0
        %1532 = vmatpush2.msra.mxu0 0.0
        %1533 = vmatprep.mubr.f32.mxu0 0.0
        %1534 = vmatmul.mubr.f32.gmra.mxu0 %v1044
        %v1535 = vpop.f32.mrf.mxu0
        %v1536 = vadd.f32 %v1467, %v1535
        %v1537 = vpop.f32.mrf.mxu0
        %1538 = vdwg.mxu0
        %v1539 = vadd.f32 %v1443, %v1536
        %1540 = vst [vmem:[%s545] sm:$0xff] %v1539
        %s1541 = sand.u32 %s319, 1
        %s1542 = scalar_lea.sflag [#allocation6], %s1541
        %s1543 = sand.u32 %s319, 1
        %s1544 = smul.addr %s1543, 8
        %s1545 = scalar_lea.vmem [#allocation16], %s1544
        // Predicated region
        $region101: #{tpu_custom_call.1} parent=71 // pred_check
          %p1546 = pneg %p329
        $region102: #{tpu_custom_call.1} parent=71 // pred_check_branch
          %1548 = sbr.rel (%p1546) target = $region104
        $region103: #{tpu_custom_call.1} parent=71 // pred_region
          %s1550 = ssub.s32 128, 128
          %1551 = vsyncadd %s1542, %s1550
          %s1552 = smul.addr %s33, 128
          %s1553 = scalar_lea.hbm %s13, %s1552
          %s1555 = sshll.u32 %s1545, 4
          %s1556 = int_to_ptr.vmem [resolvable:$true] %s1555
          %1558 = dma.vmem_to_hbm [thread:$0]  %s1556, 128, %s1553, %s1542
        $region104: #{tpu_custom_call.1} parent=71 // pred_fallthru
          _
      $region72: #{tpu_custom_call.1} parent=5 // pred_fallthru
        _
      %p1559 = scmp.le.s32.totalorder 2, %s28
      // Predicated region
      $region105: #{tpu_custom_call.1} parent=5 // pred_check
        %p1560 = pneg %p1559
      $region106: #{tpu_custom_call.1} parent=5 // pred_check_branch
        %1562 = sbr.rel (%p1560) target = $region108
      $region107: #{tpu_custom_call.1} parent=5 // pred_region
        %s1563 = ssub.s32 %s28, 2
        // Predicated region
        $region109: #{tpu_custom_call.1} parent=107 // pred_check
          %p1564 = pneg %p335
        $region110: #{tpu_custom_call.1} parent=107 // pred_check_branch
          %1566 = sbr.rel (%p1564) target = $region112
        $region111: #{tpu_custom_call.1} parent=107 // pred_region
          %s1567 = sand.u32 %s320, 1
          %s1568 = scalar_lea.sflag [#allocation6], %s1567
          %s1569 = sand.u32 %s320, 1
          %s1570 = smul.addr %s1569, 8
          %s1571 = scalar_lea.vmem [#allocation16], %s1570
          %1572 = dma.done %s1568, 128
        $region112: #{tpu_custom_call.1} parent=107 // pred_fallthru
          _
      $region108: #{tpu_custom_call.1} parent=5 // pred_fallthru
        _
    $region6: #{tpu_custom_call.1} parent=1 // loop_footer
      %s32 = sadd.s32 1, %s28
    $region7: #{tpu_custom_call.1} parent=1 // loop_footer_branch
      %27 = sbr.rel target = $region3
    $region8: #{tpu_custom_call.1} parent=1 // loop_exit
      _
    %1573 = vsyncpa [#allocation5], 1
    %s1574 = scalar_lea.sflag [#allocation5], 1
    %1575 = vsyncpa %s1574, 1
    %1576 = vsyncpa [#allocation8], 1
    %1577 = vsyncpa [#allocation11], 1
    %1578 = vsyncpa [#allocation14], 1
    %1579 = vsyncpa [#allocation6], 1
    %s1580 = scalar_lea.sflag [#allocation6], 1
    %1581 = vsyncpa %s1580, 1

</llo_original>
